<compile_context>
chip_gen: v5e
topology: v5e:2x2
jax: 0.10.0
libtpu: 0.0.40
codegen_flags: <defaults>
</compile_context>

<pallas_src>
import functools
import math

import jax
import jax.numpy as jnp
import numpy as np
from jax.experimental import pallas as pl
from jax.experimental.pallas import tpu as pltpu


# ----------------------------------------------------------------------------
# Gaussian taps as plain Python floats (mirrors create_1D_Gaussian_kernel).
# ----------------------------------------------------------------------------
def _gaussian_1d_taps(standard_deviation: float):
    std = float(standard_deviation)
    size = int(4 * std + 1)
    mu = float(size / 2 // 1)
    denominator = float(std ** 2 * 2)
    z = math.sqrt(2.0 * math.pi) * std
    vals = [math.exp(-((i - mu) ** 2) / denominator) / z for i in range(size)]
    s = sum(vals)
    return tuple(v / s for v in vals)


# ----------------------------------------------------------------------------
# Pallas kernel: per grid step, PB image planes -> low / high / hybrid planes.
# ----------------------------------------------------------------------------
def _hybrid_kernel(x1_ref, x2_ref, low_ref, high_ref, hyb_ref,
                   xpad_ref, trow_ref, *, taps, half, m, n):
    # x1_ref/x2_ref : (PB, m, n) unpadded planes in VMEM
    # low/high/hyb  : (PB, m, n) output planes in VMEM
    # xpad_ref      : (PB, m+2h, n+2h) zero-halo scratch (reused for both images)
    # trow_ref      : (PB, m+2h, n)    row-pass intermediate scratch
    K = len(taps)
    pb, Mp, Np = xpad_ref.shape

    # Zero the halo strips (tiny; done every step so each TensorCore's scratch
    # copy is initialized under megacore sharding).  Interior is overwritten.
    if half > 0:
        zrow = jnp.zeros((pb, half, Np), jnp.float32)
        xpad_ref[:, 0:half, :] = zrow
        xpad_ref[:, Mp - half:Mp, :] = zrow
        zcol = jnp.zeros((pb, Mp, half), jnp.float32)
        xpad_ref[:, :, 0:half] = zcol
        xpad_ref[:, :, Np - half:Np] = zcol

    def separable_blur():
        # Horizontal (lane-axis) pass: K shifted slices * constant taps (VPU).
        tmp = taps[0] * xpad_ref[:, :, 0:n]
        for kj in range(1, K):
            tmp = tmp + taps[kj] * xpad_ref[:, :, kj:kj + n]
        trow_ref[...] = tmp                       # stage (PB, Mp, n) in VMEM
        # Vertical (sublane-axis) pass: K shifted slices of the staged rows.
        out = taps[0] * trow_ref[:, 0:m, :]
        for ki in range(1, K):
            out = out + taps[ki] * trow_ref[:, ki:ki + m, :]
        return out                                # (PB, m, n)

    # Low-pass of image1.
    xpad_ref[:, half:half + m, half:half + n] = x1_ref[...]
    low_ref[...] = separable_blur()

    # Low-pass of image2 (reuse the same scratch; halo is still zero).
    xpad_ref[:, half:half + m, half:half + n] = x2_ref[...]
    high = x2_ref[...] - separable_blur()
    high_ref[...] = high

    # Hybrid = clip(low + high); re-read the just-written low block instead of
    # keeping it live across the second blur.
    hyb_ref[...] = jnp.clip(low_ref[...] + high, 0.0, 1.0)


# ----------------------------------------------------------------------------
# Grid coarsening: pick planes-per-block under a per-step VMEM budget.
# ----------------------------------------------------------------------------
def _choose_planes_per_block(num_planes, m, n, half, budget_bytes=8 << 20):
    Mp, Np = m + 2 * half, n + 2 * half

    def vmem_est(pb):
        # 2 inputs + 3 outputs, double-buffered, + padded scratch + row scratch.
        return 4 * pb * (2 * (2 + 3) * m * n + Mp * Np + Mp * n)

    fits = [pb for pb in range(1, num_planes + 1)
            if num_planes % pb == 0 and vmem_est(pb) <= budget_bytes]
    if not fits:
        return 1
    # Prefer >= 2 grid steps so both v7x TensorCores get work.
    multi = [pb for pb in fits if num_planes // pb >= 2]
    return max(multi) if multi else max(fits)


# ----------------------------------------------------------------------------
# Wrapper: HybridImageModel.forward
# ----------------------------------------------------------------------------
def hybrid_image_forward(image1, image2, cutoff_standarddeviation):
    """image1, image2: (b, c, m, n) float32.  Returns (low, high, hybrid),
    each (b, c, m, n) float32 — identical semantics to the PyTorch module."""
    b, c, m, n = image1.shape
    std = float(cutoff_standarddeviation)
    taps = _gaussian_1d_taps(std)
    K = len(taps)
    if K % 2 == 0:
        raise ValueError(
            f"Gaussian kernel size K={K} is even; the reference module is only "
            f"well-defined for odd kernel sizes (pick a std with int(4*std+1) odd).")
    half = (K - 1) // 2
    Mp, Np = m + 2 * half, n + 2 * half

    # Collapse (b, c) into one plane axis (free, contiguous reshape).
    P = b * c
    x1 = image1.astype(jnp.float32).reshape(P, m, n)
    x2 = image2.astype(jnp.float32).reshape(P, m, n)

    pb = _choose_planes_per_block(P, m, n, half)
    grid = (P // pb,)

    spec = pl.BlockSpec((pb, m, n), lambda i: (i, 0, 0))
    out_shape = tuple(jax.ShapeDtypeStruct((P, m, n), jnp.float32)
                      for _ in range(3))

    kern = functools.partial(_hybrid_kernel, taps=taps, half=half, m=m, n=n)

    low, high, hyb = pl.pallas_call(
        kern,
        out_shape=out_shape,
        grid=grid,
        in_specs=[spec, spec],
        out_specs=(spec, spec, spec),
        scratch_shapes=[
            pltpu.VMEM((pb, Mp, Np), jnp.float32),   # zero-padded plane scratch
            pltpu.VMEM((pb, Mp, n), jnp.float32),    # row-pass intermediate
        ],
        compiler_params=pltpu.CompilerParams(
            dimension_semantics=("parallel",)),
    )(x1, x2)

    reshape = lambda t: t.reshape(b, c, m, n)
    return reshape(low), reshape(high), reshape(hyb)


# ----------------------------------------------------------------------------
# Pure-JAX reference (correctness check only).
# ----------------------------------------------------------------------------
def _reference(image1, image2, std):
    b, c, m, n = image1.shape
    taps = jnp.asarray(_gaussian_1d_taps(std), jnp.float32)
    K = taps.shape[0]
    half = (K - 1) // 2
    k2d = jnp.outer(taps, taps)
    w = jnp.broadcast_to(k2d[None, None], (c, 1, K, K))

    def depthwise(x):
        return jax.lax.conv_general_dilated(
            x, w, window_strides=(1, 1),
            padding=((half, half), (half, half)),
            dimension_numbers=("NCHW", "OIHW", "NCHW"),
            feature_group_count=c)

    low = depthwise(image1)
    high = image2 - depthwise(image2)
    return low, high, jnp.clip(low + high, 0.0, 1.0)


if __name__ == "__main__":
    key = jax.random.PRNGKey(0)
    k1, k2 = jax.random.split(key)
    b, c, m, n = 2, 4, 16, 16
    image1 = jax.random.uniform(k1, (b, c, m, n), dtype=jnp.float32)
    image2 = jax.random.uniform(k2, (b, c, m, n), dtype=jnp.float32)
    cutoff_std = 1.0  # -> 5x5 Gaussian kernel

    low, high, hyb = hybrid_image_forward(image1, image2, cutoff_std)
    jax.block_until_ready((low, high, hyb))

    low_r, high_r, hyb_r = _reference(image1, image2, cutoff_std)
    np.testing.assert_allclose(np.asarray(low), np.asarray(low_r), atol=1e-4)
    np.testing.assert_allclose(np.asarray(high), np.asarray(high_r), atol=1e-4)
    np.testing.assert_allclose(np.asarray(hyb), np.asarray(hyb_r), atol=1e-4)

    print("KERNEL_OK")
</pallas_src>

<mosaic_0001>
module attributes {stable_mosaic.version = 11 : i64} {
  func.func @_hybrid_kernel(%arg0: i32, %arg1: memref<4x16x16xf32, #tpu.memory_space<vmem>>, %arg2: memref<4x16x16xf32, #tpu.memory_space<vmem>>, %arg3: memref<4x16x16xf32, #tpu.memory_space<vmem>>, %arg4: memref<4x16x16xf32, #tpu.memory_space<vmem>>, %arg5: memref<4x16x16xf32, #tpu.memory_space<vmem>>, %arg6: memref<4x20x20xf32, #tpu.memory_space<vmem>>, %arg7: memref<4x20x16xf32, #tpu.memory_space<vmem>>) attributes {dimension_semantics = [#tpu.dimension_semantics<parallel>], iteration_bounds = array<i64: 2>, scalar_prefetch = 0 : i64, scratch_operands = 2 : i64, tpu.core_type = #tpu.core_type<tc>, window_params = [{transform_indices = @transform_0, window_bounds = array<i64: 4, 16, 16>}, {transform_indices = @transform_1, window_bounds = array<i64: 4, 16, 16>}, {transform_indices = @transform_2, window_bounds = array<i64: 4, 16, 16>}, {transform_indices = @transform_3, window_bounds = array<i64: 4, 16, 16>}, {transform_indices = @transform_4, window_bounds = array<i64: 4, 16, 16>}]} {
    %cst = arith.constant 0.000000e+00 : f32
    %0 = vector.broadcast %cst : f32 to vector<4x2x20xf32>
    %c0 = arith.constant 0 : index
    %c0_0 = arith.constant 0 : index
    %c0_1 = arith.constant 0 : index
    %1 = vector.load %arg6[%c0, %c0_0, %c0_1] : memref<4x20x20xf32, #tpu.memory_space<vmem>>, vector<4x2x20xf32>
    tpu.vector_store %arg6[%c0, %c0_0, %c0_1], %0 {strides = array<i32>} : memref<4x20x20xf32, #tpu.memory_space<vmem>>, vector<4x2x20xf32>,
    %c0_2 = arith.constant 0 : index
    %c18 = arith.constant 18 : index
    %c0_3 = arith.constant 0 : index
    %2 = vector.load %arg6[%c0_2, %c18, %c0_3] : memref<4x20x20xf32, #tpu.memory_space<vmem>>, vector<4x2x20xf32>
    tpu.vector_store %arg6[%c0_2, %c18, %c0_3], %0 {strides = array<i32>} : memref<4x20x20xf32, #tpu.memory_space<vmem>>, vector<4x2x20xf32>,
    %cst_4 = arith.constant 0.000000e+00 : f32
    %3 = vector.broadcast %cst_4 : f32 to vector<4x20x2xf32>
    %c0_5 = arith.constant 0 : index
    %c0_6 = arith.constant 0 : index
    %c0_7 = arith.constant 0 : index
    %4 = vector.load %arg6[%c0_5, %c0_6, %c0_7] : memref<4x20x20xf32, #tpu.memory_space<vmem>>, vector<4x20x2xf32>
    tpu.vector_store %arg6[%c0_5, %c0_6, %c0_7], %3 {strides = array<i32>} : memref<4x20x20xf32, #tpu.memory_space<vmem>>, vector<4x20x2xf32>,
    %c0_8 = arith.constant 0 : index
    %c0_9 = arith.constant 0 : index
    %c18_10 = arith.constant 18 : index
    %5 = vector.load %arg6[%c0_8, %c0_9, %c18_10] : memref<4x20x20xf32, #tpu.memory_space<vmem>>, vector<4x20x2xf32>
    tpu.vector_store %arg6[%c0_8, %c0_9, %c18_10], %3 {strides = array<i32>} : memref<4x20x20xf32, #tpu.memory_space<vmem>>, vector<4x20x2xf32>,
    %c0_11 = arith.constant 0 : index
    %c0_12 = arith.constant 0 : index
    %c0_13 = arith.constant 0 : index
    %6 = vector.load %arg1[%c0_11, %c0_12, %c0_13] : memref<4x16x16xf32, #tpu.memory_space<vmem>>, vector<4x16x16xf32>
    %c0_14 = arith.constant 0 : index
    %c2 = arith.constant 2 : index
    %c2_15 = arith.constant 2 : index
    %7 = vector.load %arg6[%c0_14, %c2, %c2_15] : memref<4x20x20xf32, #tpu.memory_space<vmem>>, vector<4x16x16xf32>
    tpu.vector_store %arg6[%c0_14, %c2, %c2_15], %6 {strides = array<i32>} : memref<4x20x20xf32, #tpu.memory_space<vmem>>, vector<4x16x16xf32>,
    %c0_16 = arith.constant 0 : index
    %c0_17 = arith.constant 0 : index
    %c0_18 = arith.constant 0 : index
    %8 = vector.load %arg6[%c0_16, %c0_17, %c0_18] : memref<4x20x20xf32, #tpu.memory_space<vmem>>, vector<4x20x16xf32>
    %cst_19 = arith.constant 0.054488685 : f32
    %9 = vector.broadcast %cst_19 : f32 to vector<4x20x16xf32>
    %10 = arith.mulf %9, %8 : vector<4x20x16xf32>
    %c0_20 = arith.constant 0 : index
    %c0_21 = arith.constant 0 : index
    %c1 = arith.constant 1 : index
    %11 = vector.load %arg6[%c0_20, %c0_21, %c1] : memref<4x20x20xf32, #tpu.memory_space<vmem>>, vector<4x20x16xf32>
    %cst_22 = arith.constant 0.244201347 : f32
    %12 = vector.broadcast %cst_22 : f32 to vector<4x20x16xf32>
    %13 = arith.mulf %12, %11 : vector<4x20x16xf32>
    %14 = arith.addf %10, %13 : vector<4x20x16xf32>
    %c0_23 = arith.constant 0 : index
    %c0_24 = arith.constant 0 : index
    %c2_25 = arith.constant 2 : index
    %15 = vector.load %arg6[%c0_23, %c0_24, %c2_25] : memref<4x20x20xf32, #tpu.memory_space<vmem>>, vector<4x20x16xf32>
    %cst_26 = arith.constant 0.402619958 : f32
    %16 = vector.broadcast %cst_26 : f32 to vector<4x20x16xf32>
    %17 = arith.mulf %16, %15 : vector<4x20x16xf32>
    %18 = arith.addf %14, %17 : vector<4x20x16xf32>
    %c0_27 = arith.constant 0 : index
    %c0_28 = arith.constant 0 : index
    %c3 = arith.constant 3 : index
    %19 = vector.load %arg6[%c0_27, %c0_28, %c3] : memref<4x20x20xf32, #tpu.memory_space<vmem>>, vector<4x20x16xf32>
    %cst_29 = arith.constant 0.244201347 : f32
    %20 = vector.broadcast %cst_29 : f32 to vector<4x20x16xf32>
    %21 = arith.mulf %20, %19 : vector<4x20x16xf32>
    %22 = arith.addf %18, %21 : vector<4x20x16xf32>
    %c0_30 = arith.constant 0 : index
    %c0_31 = arith.constant 0 : index
    %c4 = arith.constant 4 : index
    %23 = vector.load %arg6[%c0_30, %c0_31, %c4] : memref<4x20x20xf32, #tpu.memory_space<vmem>>, vector<4x20x16xf32>
    %cst_32 = arith.constant 0.054488685 : f32
    %24 = vector.broadcast %cst_32 : f32 to vector<4x20x16xf32>
    %25 = arith.mulf %24, %23 : vector<4x20x16xf32>
    %26 = arith.addf %22, %25 : vector<4x20x16xf32>
    %c0_33 = arith.constant 0 : index
    %c0_34 = arith.constant 0 : index
    %c0_35 = arith.constant 0 : index
    %27 = vector.load %arg7[%c0_33, %c0_34, %c0_35] : memref<4x20x16xf32, #tpu.memory_space<vmem>>, vector<4x20x16xf32>
    tpu.vector_store %arg7[%c0_33, %c0_34, %c0_35], %26 {strides = array<i32>} : memref<4x20x16xf32, #tpu.memory_space<vmem>>, vector<4x20x16xf32>,
    %c0_36 = arith.constant 0 : index
    %c0_37 = arith.constant 0 : index
    %c0_38 = arith.constant 0 : index
    %28 = vector.load %arg7[%c0_36, %c0_37, %c0_38] : memref<4x20x16xf32, #tpu.memory_space<vmem>>, vector<4x16x16xf32>
    %cst_39 = arith.constant 0.054488685 : f32
    %29 = vector.broadcast %cst_39 : f32 to vector<4x16x16xf32>
    %30 = arith.mulf %29, %28 : vector<4x16x16xf32>
    %c0_40 = arith.constant 0 : index
    %c1_41 = arith.constant 1 : index
    %c0_42 = arith.constant 0 : index
    %31 = vector.load %arg7[%c0_40, %c1_41, %c0_42] : memref<4x20x16xf32, #tpu.memory_space<vmem>>, vector<4x16x16xf32>
    %cst_43 = arith.constant 0.244201347 : f32
    %32 = vector.broadcast %cst_43 : f32 to vector<4x16x16xf32>
    %33 = arith.mulf %32, %31 : vector<4x16x16xf32>
    %34 = arith.addf %30, %33 : vector<4x16x16xf32>
    %c0_44 = arith.constant 0 : index
    %c2_45 = arith.constant 2 : index
    %c0_46 = arith.constant 0 : index
    %35 = vector.load %arg7[%c0_44, %c2_45, %c0_46] : memref<4x20x16xf32, #tpu.memory_space<vmem>>, vector<4x16x16xf32>
    %cst_47 = arith.constant 0.402619958 : f32
    %36 = vector.broadcast %cst_47 : f32 to vector<4x16x16xf32>
    %37 = arith.mulf %36, %35 : vector<4x16x16xf32>
    %38 = arith.addf %34, %37 : vector<4x16x16xf32>
    %c0_48 = arith.constant 0 : index
    %c3_49 = arith.constant 3 : index
    %c0_50 = arith.constant 0 : index
    %39 = vector.load %arg7[%c0_48, %c3_49, %c0_50] : memref<4x20x16xf32, #tpu.memory_space<vmem>>, vector<4x16x16xf32>
    %cst_51 = arith.constant 0.244201347 : f32
    %40 = vector.broadcast %cst_51 : f32 to vector<4x16x16xf32>
    %41 = arith.mulf %40, %39 : vector<4x16x16xf32>
    %42 = arith.addf %38, %41 : vector<4x16x16xf32>
    %c0_52 = arith.constant 0 : index
    %c4_53 = arith.constant 4 : index
    %c0_54 = arith.constant 0 : index
    %43 = vector.load %arg7[%c0_52, %c4_53, %c0_54] : memref<4x20x16xf32, #tpu.memory_space<vmem>>, vector<4x16x16xf32>
    %cst_55 = arith.constant 0.054488685 : f32
    %44 = vector.broadcast %cst_55 : f32 to vector<4x16x16xf32>
    %45 = arith.mulf %44, %43 : vector<4x16x16xf32>
    %46 = arith.addf %42, %45 : vector<4x16x16xf32>
    %c0_56 = arith.constant 0 : index
    %c0_57 = arith.constant 0 : index
    %c0_58 = arith.constant 0 : index
    %47 = vector.load %arg3[%c0_56, %c0_57, %c0_58] : memref<4x16x16xf32, #tpu.memory_space<vmem>>, vector<4x16x16xf32>
    tpu.vector_store %arg3[%c0_56, %c0_57, %c0_58], %46 {strides = array<i32>} : memref<4x16x16xf32, #tpu.memory_space<vmem>>, vector<4x16x16xf32>,
    %c0_59 = arith.constant 0 : index
    %c0_60 = arith.constant 0 : index
    %c0_61 = arith.constant 0 : index
    %48 = vector.load %arg2[%c0_59, %c0_60, %c0_61] : memref<4x16x16xf32, #tpu.memory_space<vmem>>, vector<4x16x16xf32>
    %c0_62 = arith.constant 0 : index
    %c2_63 = arith.constant 2 : index
    %c2_64 = arith.constant 2 : index
    %49 = vector.load %arg6[%c0_62, %c2_63, %c2_64] : memref<4x20x20xf32, #tpu.memory_space<vmem>>, vector<4x16x16xf32>
    tpu.vector_store %arg6[%c0_62, %c2_63, %c2_64], %48 {strides = array<i32>} : memref<4x20x20xf32, #tpu.memory_space<vmem>>, vector<4x16x16xf32>,
    %c0_65 = arith.constant 0 : index
    %c0_66 = arith.constant 0 : index
    %c0_67 = arith.constant 0 : index
    %50 = vector.load %arg2[%c0_65, %c0_66, %c0_67] : memref<4x16x16xf32, #tpu.memory_space<vmem>>, vector<4x16x16xf32>
    %c0_68 = arith.constant 0 : index
    %c0_69 = arith.constant 0 : index
    %c0_70 = arith.constant 0 : index
    %51 = vector.load %arg6[%c0_68, %c0_69, %c0_70] : memref<4x20x20xf32, #tpu.memory_space<vmem>>, vector<4x20x16xf32>
    %cst_71 = arith.constant 0.054488685 : f32
    %52 = vector.broadcast %cst_71 : f32 to vector<4x20x16xf32>
    %53 = arith.mulf %52, %51 : vector<4x20x16xf32>
    %c0_72 = arith.constant 0 : index
    %c0_73 = arith.constant 0 : index
    %c1_74 = arith.constant 1 : index
    %54 = vector.load %arg6[%c0_72, %c0_73, %c1_74] : memref<4x20x20xf32, #tpu.memory_space<vmem>>, vector<4x20x16xf32>
    %cst_75 = arith.constant 0.244201347 : f32
    %55 = vector.broadcast %cst_75 : f32 to vector<4x20x16xf32>
    %56 = arith.mulf %55, %54 : vector<4x20x16xf32>
    %57 = arith.addf %53, %56 : vector<4x20x16xf32>
    %c0_76 = arith.constant 0 : index
    %c0_77 = arith.constant 0 : index
    %c2_78 = arith.constant 2 : index
    %58 = vector.load %arg6[%c0_76, %c0_77, %c2_78] : memref<4x20x20xf32, #tpu.memory_space<vmem>>, vector<4x20x16xf32>
    %cst_79 = arith.constant 0.402619958 : f32
    %59 = vector.broadcast %cst_79 : f32 to vector<4x20x16xf32>
    %60 = arith.mulf %59, %58 : vector<4x20x16xf32>
    %61 = arith.addf %57, %60 : vector<4x20x16xf32>
    %c0_80 = arith.constant 0 : index
    %c0_81 = arith.constant 0 : index
    %c3_82 = arith.constant 3 : index
    %62 = vector.load %arg6[%c0_80, %c0_81, %c3_82] : memref<4x20x20xf32, #tpu.memory_space<vmem>>, vector<4x20x16xf32>
    %cst_83 = arith.constant 0.244201347 : f32
    %63 = vector.broadcast %cst_83 : f32 to vector<4x20x16xf32>
    %64 = arith.mulf %63, %62 : vector<4x20x16xf32>
    %65 = arith.addf %61, %64 : vector<4x20x16xf32>
    %c0_84 = arith.constant 0 : index
    %c0_85 = arith.constant 0 : index
    %c4_86 = arith.constant 4 : index
    %66 = vector.load %arg6[%c0_84, %c0_85, %c4_86] : memref<4x20x20xf32, #tpu.memory_space<vmem>>, vector<4x20x16xf32>
    %cst_87 = arith.constant 0.054488685 : f32
    %67 = vector.broadcast %cst_87 : f32 to vector<4x20x16xf32>
    %68 = arith.mulf %67, %66 : vector<4x20x16xf32>
    %69 = arith.addf %65, %68 : vector<4x20x16xf32>
    %c0_88 = arith.constant 0 : index
    %c0_89 = arith.constant 0 : index
    %c0_90 = arith.constant 0 : index
    %70 = vector.load %arg7[%c0_88, %c0_89, %c0_90] : memref<4x20x16xf32, #tpu.memory_space<vmem>>, vector<4x20x16xf32>
    tpu.vector_store %arg7[%c0_88, %c0_89, %c0_90], %69 {strides = array<i32>} : memref<4x20x16xf32, #tpu.memory_space<vmem>>, vector<4x20x16xf32>,
    %c0_91 = arith.constant 0 : index
    %c0_92 = arith.constant 0 : index
    %c0_93 = arith.constant 0 : index
    %71 = vector.load %arg7[%c0_91, %c0_92, %c0_93] : memref<4x20x16xf32, #tpu.memory_space<vmem>>, vector<4x16x16xf32>
    %cst_94 = arith.constant 0.054488685 : f32
    %72 = vector.broadcast %cst_94 : f32 to vector<4x16x16xf32>
    %73 = arith.mulf %72, %71 : vector<4x16x16xf32>
    %c0_95 = arith.constant 0 : index
    %c1_96 = arith.constant 1 : index
    %c0_97 = arith.constant 0 : index
    %74 = vector.load %arg7[%c0_95, %c1_96, %c0_97] : memref<4x20x16xf32, #tpu.memory_space<vmem>>, vector<4x16x16xf32>
    %cst_98 = arith.constant 0.244201347 : f32
    %75 = vector.broadcast %cst_98 : f32 to vector<4x16x16xf32>
    %76 = arith.mulf %75, %74 : vector<4x16x16xf32>
    %77 = arith.addf %73, %76 : vector<4x16x16xf32>
    %c0_99 = arith.constant 0 : index
    %c2_100 = arith.constant 2 : index
    %c0_101 = arith.constant 0 : index
    %78 = vector.load %arg7[%c0_99, %c2_100, %c0_101] : memref<4x20x16xf32, #tpu.memory_space<vmem>>, vector<4x16x16xf32>
    %cst_102 = arith.constant 0.402619958 : f32
    %79 = vector.broadcast %cst_102 : f32 to vector<4x16x16xf32>
    %80 = arith.mulf %79, %78 : vector<4x16x16xf32>
    %81 = arith.addf %77, %80 : vector<4x16x16xf32>
    %c0_103 = arith.constant 0 : index
    %c3_104 = arith.constant 3 : index
    %c0_105 = arith.constant 0 : index
    %82 = vector.load %arg7[%c0_103, %c3_104, %c0_105] : memref<4x20x16xf32, #tpu.memory_space<vmem>>, vector<4x16x16xf32>
    %cst_106 = arith.constant 0.244201347 : f32
    %83 = vector.broadcast %cst_106 : f32 to vector<4x16x16xf32>
    %84 = arith.mulf %83, %82 : vector<4x16x16xf32>
    %85 = arith.addf %81, %84 : vector<4x16x16xf32>
    %c0_107 = arith.constant 0 : index
    %c4_108 = arith.constant 4 : index
    %c0_109 = arith.constant 0 : index
    %86 = vector.load %arg7[%c0_107, %c4_108, %c0_109] : memref<4x20x16xf32, #tpu.memory_space<vmem>>, vector<4x16x16xf32>
    %cst_110 = arith.constant 0.054488685 : f32
    %87 = vector.broadcast %cst_110 : f32 to vector<4x16x16xf32>
    %88 = arith.mulf %87, %86 : vector<4x16x16xf32>
    %89 = arith.addf %85, %88 : vector<4x16x16xf32>
    %90 = arith.subf %50, %89 : vector<4x16x16xf32>
    %c0_111 = arith.constant 0 : index
    %c0_112 = arith.constant 0 : index
    %c0_113 = arith.constant 0 : index
    %91 = vector.load %arg4[%c0_111, %c0_112, %c0_113] : memref<4x16x16xf32, #tpu.memory_space<vmem>>, vector<4x16x16xf32>
    tpu.vector_store %arg4[%c0_111, %c0_112, %c0_113], %90 {strides = array<i32>} : memref<4x16x16xf32, #tpu.memory_space<vmem>>, vector<4x16x16xf32>,
    %c0_114 = arith.constant 0 : index
    %c0_115 = arith.constant 0 : index
    %c0_116 = arith.constant 0 : index
    %92 = vector.load %arg3[%c0_114, %c0_115, %c0_116] : memref<4x16x16xf32, #tpu.memory_space<vmem>>, vector<4x16x16xf32>
    %93 = arith.addf %92, %90 : vector<4x16x16xf32>
    %cst_117 = arith.constant 0.000000e+00 : f32
    %cst_118 = arith.constant 1.000000e+00 : f32
    %94 = vector.broadcast %cst_117 : f32 to vector<4x16x16xf32>
    %95 = arith.maximumf %94, %93 : vector<4x16x16xf32>
    %96 = vector.broadcast %cst_118 : f32 to vector<4x16x16xf32>
    %97 = arith.minimumf %96, %95 : vector<4x16x16xf32>
    %c0_119 = arith.constant 0 : index
    %c0_120 = arith.constant 0 : index
    %c0_121 = arith.constant 0 : index
    %98 = vector.load %arg5[%c0_119, %c0_120, %c0_121] : memref<4x16x16xf32, #tpu.memory_space<vmem>>, vector<4x16x16xf32>
    tpu.vector_store %arg5[%c0_119, %c0_120, %c0_121], %97 {strides = array<i32>} : memref<4x16x16xf32, #tpu.memory_space<vmem>>, vector<4x16x16xf32>,
    return
  }
  func.func @transform_0(%arg0: i32) -> (i32, i32, i32) {
    %c0_i32 = arith.constant 0 : i32
    %c0_i32_0 = arith.constant 0 : i32
    %c0_i32_1 = arith.constant 0 : i32
    return %arg0, %c0_i32, %c0_i32_0 : i32, i32, i32
  }
  func.func @transform_1(%arg0: i32) -> (i32, i32, i32) {
    %c0_i32 = arith.constant 0 : i32
    %c0_i32_0 = arith.constant 0 : i32
    %c0_i32_1 = arith.constant 0 : i32
    return %arg0, %c0_i32, %c0_i32_0 : i32, i32, i32
  }
  func.func @transform_2(%arg0: i32) -> (i32, i32, i32) {
    %c0_i32 = arith.constant 0 : i32
    %c0_i32_0 = arith.constant 0 : i32
    %c0_i32_1 = arith.constant 0 : i32
    return %arg0, %c0_i32, %c0_i32_0 : i32, i32, i32
  }
  func.func @transform_3(%arg0: i32) -> (i32, i32, i32) {
    %c0_i32 = arith.constant 0 : i32
    %c0_i32_0 = arith.constant 0 : i32
    %c0_i32_1 = arith.constant 0 : i32
    return %arg0, %c0_i32, %c0_i32_0 : i32, i32, i32
  }
  func.func @transform_4(%arg0: i32) -> (i32, i32, i32) {
    %c0_i32 = arith.constant 0 : i32
    %c0_i32_0 = arith.constant 0 : i32
    %c0_i32_1 = arith.constant 0 : i32
    return %arg0, %c0_i32, %c0_i32_0 : i32, i32, i32
  }
}

</mosaic_0001>

<llo_original>
// kernel: tpu_custom_call.1
$region0: #{tpu_custom_call.1}
  #allocation0 [shape = 'u32[]', space=smem, size = 0x4, offset = 0x4, fixed_abs, tag = 'smem constant byte address 0x4 - core index']
  #allocation1 [shape = 'u32[72,128]{1,0:T(1,128)}', space=vmem, size = 0x9000, scoped, tag = 'internal scratch']
  #allocation2 [shape = 'f32[4,20,20]{2,1,0:T(8,128)}', space=vmem, size = 0xc000, scoped, tag = 'scratch operand']
  #allocation3 [shape = 'f32[4,20,16]{2,1,0:T(8,128)}', space=vmem, size = 0xc000, scoped, tag = 'scratch operand']
  %s0 = inlined_call_operand.hbm [shape: f32[8,16,16], index: 0, kind: input, shape index: {}]
  %s1 = inlined_call_operand.hbm [shape: f32[8,16,16], index: 1, kind: input, shape index: {}]
  %s2 = inlined_call_operand.hbm [shape: f32[8,16,16], index: 2, kind: output, shape index: {0}]
  %s3 = inlined_call_operand.hbm [shape: f32[8,16,16], index: 3, kind: output, shape index: {1}]
  %s4 = inlined_call_operand.hbm [shape: f32[8,16,16], index: 4, kind: output, shape index: {2}]
  %5 = xla_tuple %s2, %s3, %s4
  %s6 = sld [smem:[#allocation0]]
  $region65: #{tpu_custom_call.1} parent=0
    _
  %s8 = ssub.s32 1, %s6
  %s9 = scalar_select 0, %s8, %s6
  $region1: #{tpu_custom_call.1} parent=0
    #allocation4 [shape = 'u8[65536]{0}', space=vmem, size = 0x10000, scoped, tag = 'input window, operand 0']
    #allocation5 [shape = 's32[2]{0}', space=sflag, size = 0x8, scoped, tag = 'scoped memory for tpu_custom_call.1']
    #allocation6 [shape = 's32[2]{0}', space=sflag, size = 0x8, scoped, tag = 'scoped memory for tpu_custom_call.1']
    #allocation7 [shape = 'u8[65536]{0}', space=vmem, size = 0x10000, scoped, tag = 'input window, operand 1']
    #allocation8 [shape = 's32[2]{0}', space=sflag, size = 0x8, scoped, tag = 'scoped memory for tpu_custom_call.1']
    #allocation9 [shape = 'u8[65536]{0}', space=vmem, size = 0x10000, scoped, tag = 'output window, operand 0']
    #allocation10 [shape = 'u8[65536]{0}', space=vmem, size = 0x10000, scoped, tag = 'output window, operand 1']
    #allocation11 [shape = 's32[2]{0}', space=sflag, size = 0x8, scoped, tag = 'scoped memory for tpu_custom_call.1']
    #allocation12 [shape = 'u8[65536]{0}', space=vmem, size = 0x10000, scoped, tag = 'output window, operand 2']
    %10 = vsyncpa [#allocation5], 0
    %s11 = scalar_lea.sflag [#allocation5], 1
    %12 = vsyncpa %s11, 0
    %13 = vsyncpa [#allocation8], 0
    %s14 = scalar_lea.sflag [#allocation8], 1
    %15 = vsyncpa %s14, 0
    %16 = vsyncpa [#allocation6], 0
    %s17 = scalar_lea.sflag [#allocation6], 1
    %18 = vsyncpa %s17, 0
    %19 = vsyncpa [#allocation11], 0
    %s20 = scalar_lea.sflag [#allocation11], 1
    %21 = vsyncpa %s20, 0
    loop: start=0, step=1, limit=4
    $region2: #{tpu_custom_call.1} parent=1 // loop_pre_header
      _
    $region3: #{tpu_custom_call.1} parent=1 // loop_header
      %s23 = sphi 0, %s27
      %p24 = scmp.ge.s32.totalorder %s23, 4
      %s33 = sphi 0, %s35
      %s36 = sphi 0, %s33
      %s37 = sphi 0, %s36
      %s53 = sphi 0, %s37
      %s59 = sphi 0, %s61
      %s62 = sphi 0, %s59
      %s63 = sphi 0, %s62
      %s79 = sphi 0, %s63
      %s85 = sphi 0, %s87
      %s88 = sphi 0, %s85
      %s89 = sphi 0, %s88
      %s105 = sphi 0, %s89
      %s111 = sphi 0, %s113
      %s114 = sphi 0, %s111
      %s115 = sphi 0, %s114
      %s131 = sphi 0, %s115
      %s137 = sphi 0, %s139
      %s140 = sphi 0, %s137
      %s141 = sphi 0, %s140
      %s157 = sphi 0, %s141
    $region4: #{tpu_custom_call.1} parent=1 // loop_header_branch
      %26 = sbr.rel (%p24) target = $region8
    $region5: #{tpu_custom_call.1} parent=1 // loop_body
      %s28 = ssub.s32 %s23, 1
      %s29 = ssub.s32 %s23, 2
      %s30 = sadd.s32 %s23, 1
      %s31 = ssub.s32 %s23, %s30
      %p32 = scmp.eq.s32.totalorder %s31, 0
      %s34 = sadd.s32 %s33, 1
      %s35 = scalar_select %p32, %s33, %s34
      %p38 = pneg %p32
      %p39 = scmp.eq.s32.totalorder %s23, 1
      %p40 = por %p38, %p39
      %p41 = scmp.ne.s32.totalorder %s33, %s36
      %p42 = scmp.eq.s32.totalorder %s23, 0
      %p43 = por %p41, %p42
      %p44 = scmp.ne.s32.totalorder %s33, %s36
      %p45 = scmp.eq.s32.totalorder %s28, 1
      %p46 = por %p44, %p45
      %p47 = scmp.ne.s32.totalorder %s36, %s37
      %p48 = scmp.eq.s32.totalorder %s28, 0
      %p49 = por %p47, %p48
      %p50 = scmp.ne.s32.totalorder %s36, %s37
      %p51 = scmp.eq.s32.totalorder %s29, 1
      %p52 = por %p50, %p51
      %p54 = scmp.ne.s32.totalorder %s37, %s53
      %p55 = scmp.eq.s32.totalorder %s29, 0
      %p56 = por %p54, %p55
      %s57 = ssub.s32 %s23, %s30
      %p58 = scmp.eq.s32.totalorder %s57, 0
      %s60 = sadd.s32 %s59, 1
      %s61 = scalar_select %p58, %s59, %s60
      %p64 = pneg %p58
      %p65 = scmp.eq.s32.totalorder %s23, 1
      %p66 = por %p64, %p65
      %p67 = scmp.ne.s32.totalorder %s59, %s62
      %p68 = scmp.eq.s32.totalorder %s23, 0
      %p69 = por %p67, %p68
      %p70 = scmp.ne.s32.totalorder %s59, %s62
      %p71 = scmp.eq.s32.totalorder %s28, 1
      %p72 = por %p70, %p71
      %p73 = scmp.ne.s32.totalorder %s62, %s63
      %p74 = scmp.eq.s32.totalorder %s28, 0
      %p75 = por %p73, %p74
      %p76 = scmp.ne.s32.totalorder %s62, %s63
      %p77 = scmp.eq.s32.totalorder %s29, 1
      %p78 = por %p76, %p77
      %p80 = scmp.ne.s32.totalorder %s63, %s79
      %p81 = scmp.eq.s32.totalorder %s29, 0
      %p82 = por %p80, %p81
      %s83 = ssub.s32 %s23, %s30
      %p84 = scmp.eq.s32.totalorder %s83, 0
      %s86 = sadd.s32 %s85, 1
      %s87 = scalar_select %p84, %s85, %s86
      %p90 = pneg %p84
      %p91 = scmp.eq.s32.totalorder %s23, 1
      %p92 = por %p90, %p91
      %p93 = scmp.ne.s32.totalorder %s85, %s88
      %p94 = scmp.eq.s32.totalorder %s23, 0
      %p95 = por %p93, %p94
      %p96 = scmp.ne.s32.totalorder %s85, %s88
      %p97 = scmp.eq.s32.totalorder %s28, 1
      %p98 = por %p96, %p97
      %p99 = scmp.ne.s32.totalorder %s88, %s89
      %p100 = scmp.eq.s32.totalorder %s28, 0
      %p101 = por %p99, %p100
      %p102 = scmp.ne.s32.totalorder %s88, %s89
      %p103 = scmp.eq.s32.totalorder %s29, 1
      %p104 = por %p102, %p103
      %p106 = scmp.ne.s32.totalorder %s89, %s105
      %p107 = scmp.eq.s32.totalorder %s29, 0
      %p108 = por %p106, %p107
      %s109 = ssub.s32 %s23, %s30
      %p110 = scmp.eq.s32.totalorder %s109, 0
      %s112 = sadd.s32 %s111, 1
      %s113 = scalar_select %p110, %s111, %s112
      %p116 = pneg %p110
      %p117 = scmp.eq.s32.totalorder %s23, 1
      %p118 = por %p116, %p117
      %p119 = scmp.ne.s32.totalorder %s111, %s114
      %p120 = scmp.eq.s32.totalorder %s23, 0
      %p121 = por %p119, %p120
      %p122 = scmp.ne.s32.totalorder %s111, %s114
      %p123 = scmp.eq.s32.totalorder %s28, 1
      %p124 = por %p122, %p123
      %p125 = scmp.ne.s32.totalorder %s114, %s115
      %p126 = scmp.eq.s32.totalorder %s28, 0
      %p127 = por %p125, %p126
      %p128 = scmp.ne.s32.totalorder %s114, %s115
      %p129 = scmp.eq.s32.totalorder %s29, 1
      %p130 = por %p128, %p129
      %p132 = scmp.ne.s32.totalorder %s115, %s131
      %p133 = scmp.eq.s32.totalorder %s29, 0
      %p134 = por %p132, %p133
      %s135 = ssub.s32 %s23, %s30
      %p136 = scmp.eq.s32.totalorder %s135, 0
      %s138 = sadd.s32 %s137, 1
      %s139 = scalar_select %p136, %s137, %s138
      %p142 = pneg %p136
      %p143 = scmp.eq.s32.totalorder %s23, 1
      %p144 = por %p142, %p143
      %p145 = scmp.ne.s32.totalorder %s137, %s140
      %p146 = scmp.eq.s32.totalorder %s23, 0
      %p147 = por %p145, %p146
      %p148 = scmp.ne.s32.totalorder %s137, %s140
      %p149 = scmp.eq.s32.totalorder %s28, 1
      %p150 = por %p148, %p149
      %p151 = scmp.ne.s32.totalorder %s140, %s141
      %p152 = scmp.eq.s32.totalorder %s28, 0
      %p153 = por %p151, %p152
      %p154 = scmp.ne.s32.totalorder %s140, %s141
      %p155 = scmp.eq.s32.totalorder %s29, 1
      %p156 = por %p154, %p155
      %p158 = scmp.ne.s32.totalorder %s141, %s157
      %p159 = scmp.eq.s32.totalorder %s29, 0
      %p160 = por %p158, %p159
      %p161 = scmp.le.s32.totalorder 1, %s23
      %p162 = scmp.lt.s32.totalorder %s23, 3
      %p163 = pnand %p161, %p162
      %p164 = pneg %p163
      // Predicated region
      $region9: #{tpu_custom_call.1} parent=5 // pred_check
        _
      $region10: #{tpu_custom_call.1} parent=5 // pred_check_branch
        %166 = sbr.rel (%p163) target = $region12
      $region11: #{tpu_custom_call.1} parent=5 // pred_region
        %s167 = ssub.s32 %s23, 1
      $region12: #{tpu_custom_call.1} parent=5 // pred_fallthru
        _
      %p168 = scmp.lt.s32.totalorder %s23, 2
      // Predicated region
      $region13: #{tpu_custom_call.1} parent=5 // pred_check
        %p169 = pneg %p168
      $region14: #{tpu_custom_call.1} parent=5 // pred_check_branch
        %171 = sbr.rel (%p169) target = $region16
      $region15: #{tpu_custom_call.1} parent=5 // pred_region
        // Predicated region
        $region17: #{tpu_custom_call.1} parent=15 // pred_check
          %p172 = pneg %p43
        $region18: #{tpu_custom_call.1} parent=15 // pred_check_branch
          %174 = sbr.rel (%p172) target = $region20
        $region19: #{tpu_custom_call.1} parent=15 // pred_region
          %s175 = sand.u32 %s33, 1
          %s176 = scalar_lea.sflag [#allocation5], %s175
          %s177 = sand.u32 %s33, 1
          %s178 = smul.addr %s177, 64
          %s179 = scalar_lea.vmem [#allocation4], %s178
          %s180 = smul.u32 4, %s23
          %182 = vsyncadd %s176, 0
          %s183 = smul.addr %s180, 2
          %s184 = smul.addr %s183, 8
          %s185 = scalar_lea.hbm %s0, %s184
          %s186 = sshll.u32 %s185, 4
          %s187 = int_to_ptr.hbm [resolvable:$true] %s186
          %s188 = sshll.u32 %s179, 4
          %s189 = int_to_ptr.vmem [resolvable:$true] %s188
          %194 = dma.hbm_to_vmem [thread:$0]  %s187, 1024, %s189, %s176, 128, 128, 8
        $region20: #{tpu_custom_call.1} parent=15 // pred_fallthru
          _
        // Predicated region
        $region21: #{tpu_custom_call.1} parent=15 // pred_check
          %p195 = pneg %p69
        $region22: #{tpu_custom_call.1} parent=15 // pred_check_branch
          %197 = sbr.rel (%p195) target = $region24
        $region23: #{tpu_custom_call.1} parent=15 // pred_region
          %s198 = sand.u32 %s59, 1
          %s199 = scalar_lea.sflag [#allocation8], %s198
          %s200 = sand.u32 %s59, 1
          %s201 = smul.addr %s200, 64
          %s202 = scalar_lea.vmem [#allocation7], %s201
          %s203 = smul.u32 4, %s23
          %205 = vsyncadd %s199, 0
          %s206 = smul.addr %s203, 2
          %s207 = smul.addr %s206, 8
          %s208 = scalar_lea.hbm %s1, %s207
          %s209 = sshll.u32 %s208, 4
          %s210 = int_to_ptr.hbm [resolvable:$true] %s209
          %s211 = sshll.u32 %s202, 4
          %s212 = int_to_ptr.vmem [resolvable:$true] %s211
          %217 = dma.hbm_to_vmem [thread:$0]  %s210, 1024, %s212, %s199, 128, 128, 8
        $region24: #{tpu_custom_call.1} parent=15 // pred_fallthru
          _
      $region16: #{tpu_custom_call.1} parent=5 // pred_fallthru
        _
      %p218 = scmp.le.s32.totalorder 1, %s23
      %p219 = scmp.lt.s32.totalorder %s23, 3
      %p220 = pnand %p218, %p219
      %p221 = pneg %p220
      // Predicated region
      $region25: #{tpu_custom_call.1} parent=5 // pred_check
        _
      $region26: #{tpu_custom_call.1} parent=5 // pred_check_branch
        %223 = sbr.rel (%p220) target = $region28
      $region27: #{tpu_custom_call.1} parent=5 // pred_region
        %s224 = ssub.s32 %s23, 1
        %s225 = sand.u32 %s36, 1
        %s226 = scalar_lea.sflag [#allocation5], %s225
        %s227 = sand.u32 %s36, 1
        %s228 = smul.addr %s227, 64
        %s229 = scalar_lea.vmem [#allocation4], %s228
        // Predicated region
        $region29: #{tpu_custom_call.1} parent=27 // pred_check
          %p230 = pneg %p49
        $region30: #{tpu_custom_call.1} parent=27 // pred_check_branch
          %232 = sbr.rel (%p230) target = $region32
        $region31: #{tpu_custom_call.1} parent=27 // pred_region
          %234 = dma.done %s226, 1024
        $region32: #{tpu_custom_call.1} parent=27 // pred_fallthru
          _
        %s235 = sand.u32 %s62, 1
        %s236 = scalar_lea.sflag [#allocation8], %s235
        %s237 = sand.u32 %s62, 1
        %s238 = smul.addr %s237, 64
        %s239 = scalar_lea.vmem [#allocation7], %s238
        // Predicated region
        $region33: #{tpu_custom_call.1} parent=27 // pred_check
          %p240 = pneg %p75
        $region34: #{tpu_custom_call.1} parent=27 // pred_check_branch
          %242 = sbr.rel (%p240) target = $region36
        $region35: #{tpu_custom_call.1} parent=27 // pred_region
          %244 = dma.done %s236, 1024
        $region36: #{tpu_custom_call.1} parent=27 // pred_fallthru
          _
        %s245 = sand.u32 %s36, 1
        %s246 = scalar_lea.sflag [#allocation5], %s245
        %s247 = sand.u32 %s36, 1
        %s248 = smul.addr %s247, 64
        %s249 = scalar_lea.vmem [#allocation4], %s248
        %p250 = pneg %p49
        %p251 = pneg %p46
        %s252 = sand.u32 %s62, 1
        %s253 = scalar_lea.sflag [#allocation8], %s252
        %s254 = sand.u32 %s62, 1
        %s255 = smul.addr %s254, 64
        %s256 = scalar_lea.vmem [#allocation7], %s255
        %p257 = pneg %p75
        %p258 = pneg %p72
        %p259 = pneg %p101
        %p260 = pneg %p98
        %s261 = sand.u32 %s88, 1
        %s262 = scalar_lea.sflag [#allocation6], %s261
        %s263 = sand.u32 %s88, 1
        %s264 = smul.addr %s263, 64
        %s265 = scalar_lea.vmem [#allocation9], %s264
        %p266 = pneg %p127
        %p267 = pneg %p124
        %s268 = sand.u32 %s28, 1
        %s269 = scalar_lea.sflag [#allocation11], %s268
        %s270 = sand.u32 %s114, 1
        %s271 = smul.addr %s270, 64
        %s272 = scalar_lea.vmem [#allocation10], %s271
        %p273 = pneg %p153
        %p274 = pneg %p150
        %s275 = sand.u32 %s28, 1
        %s276 = scalar_lea.sflag [#allocation11], %s275
        %s277 = sand.u32 %s140, 1
        %s278 = smul.addr %s277, 64
        %s279 = scalar_lea.vmem [#allocation12], %s278
        %s280 = smul.u32 4, %s28
        %s281 = smul.u32 4, %s28
        %s282 = smul.u32 4, %s28
        %s283 = smul.u32 4, %s28
        %s284 = smul.u32 4, %s28
        %vm285 = vcmask 156672
        %286 = vst.msk [vmem:[#allocation2] sm:$0x3] %vm285, 0.0
        %287 = vst.msk [vmem:[#allocation2 + $0x18] sm:$0x3] %vm285, 0.0
        %288 = vst.msk [vmem:[#allocation2 + $0x30] sm:$0x3] %vm285, 0.0
        %289 = vst.msk [vmem:[#allocation2 + $0x48] sm:$0x3] %vm285, 0.0
        %290 = vst.msk [vmem:[#allocation2 + $0x12] sm:$0x3] %vm285, 0.0
        %291 = vst.msk [vmem:[#allocation2 + $0x2a] sm:$0x3] %vm285, 0.0
        %292 = vst.msk [vmem:[#allocation2 + $0x42] sm:$0x3] %vm285, 0.0
        %293 = vst.msk [vmem:[#allocation2 + $0x5a] sm:$0x3] %vm285, 0.0
        %vm294 = vcmask 15360
        %295 = vst.msk [vmem:[#allocation2] sm:$0xff] %vm294, 0.0
        %296 = vst.msk [vmem:[#allocation2 + $0x8] sm:$0xff] %vm294, 0.0
        %vm297 = vcmask 11264
        %298 = vst.msk [vmem:[#allocation2 + $0x10] sm:$0xf] %vm297, 0.0
        %299 = vst.msk [vmem:[#allocation2 + $0x18] sm:$0xff] %vm294, 0.0
        %300 = vst.msk [vmem:[#allocation2 + $0x20] sm:$0xff] %vm294, 0.0
        %301 = vst.msk [vmem:[#allocation2 + $0x28] sm:$0xf] %vm297, 0.0
        %302 = vst.msk [vmem:[#allocation2 + $0x30] sm:$0xff] %vm294, 0.0
        %303 = vst.msk [vmem:[#allocation2 + $0x38] sm:$0xff] %vm294, 0.0
        %304 = vst.msk [vmem:[#allocation2 + $0x40] sm:$0xf] %vm297, 0.0
        %305 = vst.msk [vmem:[#allocation2 + $0x48] sm:$0xff] %vm294, 0.0
        %306 = vst.msk [vmem:[#allocation2 + $0x50] sm:$0xff] %vm294, 0.0
        %307 = vst.msk [vmem:[#allocation2 + $0x58] sm:$0xf] %vm297, 0.0
        %vm308 = vcmask 162960
        %309 = vst.msk [vmem:[#allocation2] sm:$0xff] %vm308, 0.0
        %310 = vst.msk [vmem:[#allocation2 + $0x8] sm:$0xff] %vm308, 0.0
        %vm311 = vcmask 158864
        %312 = vst.msk [vmem:[#allocation2 + $0x10] sm:$0xf] %vm311, 0.0
        %313 = vst.msk [vmem:[#allocation2 + $0x18] sm:$0xff] %vm308, 0.0
        %314 = vst.msk [vmem:[#allocation2 + $0x20] sm:$0xff] %vm308, 0.0
        %315 = vst.msk [vmem:[#allocation2 + $0x28] sm:$0xf] %vm311, 0.0
        %316 = vst.msk [vmem:[#allocation2 + $0x30] sm:$0xff] %vm308, 0.0
        %317 = vst.msk [vmem:[#allocation2 + $0x38] sm:$0xff] %vm308, 0.0
        %318 = vst.msk [vmem:[#allocation2 + $0x40] sm:$0xf] %vm311, 0.0
        %319 = vst.msk [vmem:[#allocation2 + $0x48] sm:$0xff] %vm308, 0.0
        %320 = vst.msk [vmem:[#allocation2 + $0x50] sm:$0xff] %vm308, 0.0
        %321 = vst.msk [vmem:[#allocation2 + $0x58] sm:$0xf] %vm311, 0.0
        %v322 = vld [vmem:[%s229] sm:$0xff]
        %v323 = vld [vmem:[%s229 + $0x8] sm:$0xff]
        %v324 = vld [vmem:[%s229 + $0x10] sm:$0xff]
        %v325 = vld [vmem:[%s229 + $0x18] sm:$0xff]
        %v326 = vld [vmem:[%s229 + $0x20] sm:$0xff]
        %v327 = vld [vmem:[%s229 + $0x28] sm:$0xff]
        %v328 = vld [vmem:[%s229 + $0x30] sm:$0xff]
        %v329 = vld [vmem:[%s229 + $0x38] sm:$0xff]
        %338 = vrot.lane.b32.xlu0 %v322, 2
        %v339 = vpop.permute.xlu0 %338
        %340 = vrot.lane.b32.xlu0 %v323, 2
        %v341 = vpop.permute.xlu0 %340
        %342 = vrot.lane.b32.xlu0 %v324, 2
        %v343 = vpop.permute.xlu0 %342
        %344 = vrot.lane.b32.xlu0 %v325, 2
        %v345 = vpop.permute.xlu0 %344
        %346 = vrot.lane.b32.xlu0 %v326, 2
        %v347 = vpop.permute.xlu0 %346
        %348 = vrot.lane.b32.xlu0 %v327, 2
        %v349 = vpop.permute.xlu0 %348
        %350 = vrot.lane.b32.xlu0 %v328, 2
        %v351 = vpop.permute.xlu0 %350
        %352 = vrot.lane.b32.xlu0 %v329, 2
        %v353 = vpop.permute.xlu0 %352
        %vm362 = vcmask 146448
        %363 = vst.msk [vmem:[#allocation2 + $0x2] sm:$0xff] %vm362, %v339
        %364 = vst.msk [vmem:[#allocation2 + $0xa] sm:$0xff] %vm362, %v341
        %365 = vst.msk [vmem:[#allocation2 + $0x1a] sm:$0xff] %vm362, %v343
        %366 = vst.msk [vmem:[#allocation2 + $0x22] sm:$0xff] %vm362, %v345
        %367 = vst.msk [vmem:[#allocation2 + $0x32] sm:$0xff] %vm362, %v347
        %368 = vst.msk [vmem:[#allocation2 + $0x3a] sm:$0xff] %vm362, %v349
        %369 = vst.msk [vmem:[#allocation2 + $0x4a] sm:$0xff] %vm362, %v351
        %370 = vst.msk [vmem:[#allocation2 + $0x52] sm:$0xff] %vm362, %v353
        %v371 = vld [vmem:[#allocation2] sm:$0xff]
        %v372 = vld [vmem:[#allocation2 + $0x8] sm:$0xff]
        %v373 = vld [vmem:[#allocation2 + $0x10] sm:$0xf]
        %v374 = vld [vmem:[#allocation2 + $0x18] sm:$0xff]
        %v375 = vld [vmem:[#allocation2 + $0x20] sm:$0xff]
        %v376 = vld [vmem:[#allocation2 + $0x28] sm:$0xf]
        %v377 = vld [vmem:[#allocation2 + $0x30] sm:$0xff]
        %v378 = vld [vmem:[#allocation2 + $0x38] sm:$0xff]
        %v379 = vld [vmem:[#allocation2 + $0x40] sm:$0xf]
        %v380 = vld [vmem:[#allocation2 + $0x48] sm:$0xff]
        %v381 = vld [vmem:[#allocation2 + $0x50] sm:$0xff]
        %v382 = vld [vmem:[#allocation2 + $0x58] sm:$0xf]
        %v383 = vmul.f32 %v371, 0.054488685
        %v384 = vmul.f32 %v372, 0.054488685
        %v385 = vmul.f32 %v373, 0.054488685
        %v386 = vmul.f32 %v374, 0.054488685
        %v387 = vmul.f32 %v375, 0.054488685
        %v388 = vmul.f32 %v376, 0.054488685
        %v389 = vmul.f32 %v377, 0.054488685
        %v390 = vmul.f32 %v378, 0.054488685
        %v391 = vmul.f32 %v379, 0.054488685
        %v392 = vmul.f32 %v380, 0.054488685
        %v393 = vmul.f32 %v381, 0.054488685
        %v394 = vmul.f32 %v382, 0.054488685
        %v395 = vmul.f32 %v371, 0.24420135
        %v396 = vmul.f32 %v372, 0.24420135
        %v397 = vmul.f32 %v373, 0.24420135
        %v398 = vmul.f32 %v374, 0.24420135
        %v399 = vmul.f32 %v375, 0.24420135
        %v400 = vmul.f32 %v376, 0.24420135
        %v401 = vmul.f32 %v377, 0.24420135
        %v402 = vmul.f32 %v378, 0.24420135
        %v403 = vmul.f32 %v379, 0.24420135
        %v404 = vmul.f32 %v380, 0.24420135
        %v405 = vmul.f32 %v381, 0.24420135
        %v406 = vmul.f32 %v382, 0.24420135
        %419 = vrot.lane.b32.xlu0 %v395, 127
        %v420 = vpop.permute.xlu0 %419
        %421 = vrot.lane.b32.xlu0 %v396, 127
        %v422 = vpop.permute.xlu0 %421
        %423 = vrot.lane.b32.xlu0 %v397, 127
        %v424 = vpop.permute.xlu0 %423
        %425 = vrot.lane.b32.xlu0 %v398, 127
        %v426 = vpop.permute.xlu0 %425
        %427 = vrot.lane.b32.xlu0 %v399, 127
        %v428 = vpop.permute.xlu0 %427
        %429 = vrot.lane.b32.xlu0 %v400, 127
        %v430 = vpop.permute.xlu0 %429
        %431 = vrot.lane.b32.xlu0 %v401, 127
        %v432 = vpop.permute.xlu0 %431
        %433 = vrot.lane.b32.xlu0 %v402, 127
        %v434 = vpop.permute.xlu0 %433
        %435 = vrot.lane.b32.xlu0 %v403, 127
        %v436 = vpop.permute.xlu0 %435
        %437 = vrot.lane.b32.xlu0 %v404, 127
        %v438 = vpop.permute.xlu0 %437
        %439 = vrot.lane.b32.xlu0 %v405, 127
        %v440 = vpop.permute.xlu0 %439
        %441 = vrot.lane.b32.xlu0 %v406, 127
        %v442 = vpop.permute.xlu0 %441
        %v455 = vadd.f32 %v383, %v420
        %v456 = vadd.f32 %v384, %v422
        %v457 = vadd.f32 %v385, %v424
        %v458 = vadd.f32 %v386, %v426
        %v459 = vadd.f32 %v387, %v428
        %v460 = vadd.f32 %v388, %v430
        %v461 = vadd.f32 %v389, %v432
        %v462 = vadd.f32 %v390, %v434
        %v463 = vadd.f32 %v391, %v436
        %v464 = vadd.f32 %v392, %v438
        %v465 = vadd.f32 %v393, %v440
        %v466 = vadd.f32 %v394, %v442
        %v467 = vmul.f32 %v371, 0.40261996
        %v468 = vmul.f32 %v372, 0.40261996
        %v469 = vmul.f32 %v373, 0.40261996
        %v470 = vmul.f32 %v374, 0.40261996
        %v471 = vmul.f32 %v375, 0.40261996
        %v472 = vmul.f32 %v376, 0.40261996
        %v473 = vmul.f32 %v377, 0.40261996
        %v474 = vmul.f32 %v378, 0.40261996
        %v475 = vmul.f32 %v379, 0.40261996
        %v476 = vmul.f32 %v380, 0.40261996
        %v477 = vmul.f32 %v381, 0.40261996
        %v478 = vmul.f32 %v382, 0.40261996
        %491 = vrot.lane.b32.xlu0 %v467, 126
        %v492 = vpop.permute.xlu0 %491
        %493 = vrot.lane.b32.xlu0 %v468, 126
        %v494 = vpop.permute.xlu0 %493
        %495 = vrot.lane.b32.xlu0 %v469, 126
        %v496 = vpop.permute.xlu0 %495
        %497 = vrot.lane.b32.xlu0 %v470, 126
        %v498 = vpop.permute.xlu0 %497
        %499 = vrot.lane.b32.xlu0 %v471, 126
        %v500 = vpop.permute.xlu0 %499
        %501 = vrot.lane.b32.xlu0 %v472, 126
        %v502 = vpop.permute.xlu0 %501
        %503 = vrot.lane.b32.xlu0 %v473, 126
        %v504 = vpop.permute.xlu0 %503
        %505 = vrot.lane.b32.xlu0 %v474, 126
        %v506 = vpop.permute.xlu0 %505
        %507 = vrot.lane.b32.xlu0 %v475, 126
        %v508 = vpop.permute.xlu0 %507
        %509 = vrot.lane.b32.xlu0 %v476, 126
        %v510 = vpop.permute.xlu0 %509
        %511 = vrot.lane.b32.xlu0 %v477, 126
        %v512 = vpop.permute.xlu0 %511
        %513 = vrot.lane.b32.xlu0 %v478, 126
        %v514 = vpop.permute.xlu0 %513
        %v527 = vadd.f32 %v455, %v492
        %v528 = vadd.f32 %v456, %v494
        %v529 = vadd.f32 %v457, %v496
        %v530 = vadd.f32 %v458, %v498
        %v531 = vadd.f32 %v459, %v500
        %v532 = vadd.f32 %v460, %v502
        %v533 = vadd.f32 %v461, %v504
        %v534 = vadd.f32 %v462, %v506
        %v535 = vadd.f32 %v463, %v508
        %v536 = vadd.f32 %v464, %v510
        %v537 = vadd.f32 %v465, %v512
        %v538 = vadd.f32 %v466, %v514
        %539 = vrot.lane.b32.xlu0 %v395, 125
        %v540 = vpop.permute.xlu0 %539
        %541 = vrot.lane.b32.xlu0 %v396, 125
        %v542 = vpop.permute.xlu0 %541
        %543 = vrot.lane.b32.xlu0 %v397, 125
        %v544 = vpop.permute.xlu0 %543
        %545 = vrot.lane.b32.xlu0 %v398, 125
        %v546 = vpop.permute.xlu0 %545
        %547 = vrot.lane.b32.xlu0 %v399, 125
        %v548 = vpop.permute.xlu0 %547
        %549 = vrot.lane.b32.xlu0 %v400, 125
        %v550 = vpop.permute.xlu0 %549
        %551 = vrot.lane.b32.xlu0 %v401, 125
        %v552 = vpop.permute.xlu0 %551
        %553 = vrot.lane.b32.xlu0 %v402, 125
        %v554 = vpop.permute.xlu0 %553
        %555 = vrot.lane.b32.xlu0 %v403, 125
        %v556 = vpop.permute.xlu0 %555
        %557 = vrot.lane.b32.xlu0 %v404, 125
        %v558 = vpop.permute.xlu0 %557
        %559 = vrot.lane.b32.xlu0 %v405, 125
        %v560 = vpop.permute.xlu0 %559
        %561 = vrot.lane.b32.xlu0 %v406, 125
        %v562 = vpop.permute.xlu0 %561
        %v575 = vadd.f32 %v527, %v540
        %v576 = vadd.f32 %v528, %v542
        %v577 = vadd.f32 %v529, %v544
        %v578 = vadd.f32 %v530, %v546
        %v579 = vadd.f32 %v531, %v548
        %v580 = vadd.f32 %v532, %v550
        %v581 = vadd.f32 %v533, %v552
        %v582 = vadd.f32 %v534, %v554
        %v583 = vadd.f32 %v535, %v556
        %v584 = vadd.f32 %v536, %v558
        %v585 = vadd.f32 %v537, %v560
        %v586 = vadd.f32 %v538, %v562
        %599 = vrot.lane.b32.xlu0 %v383, 124
        %v600 = vpop.permute.xlu0 %599
        %601 = vrot.lane.b32.xlu0 %v384, 124
        %v602 = vpop.permute.xlu0 %601
        %603 = vrot.lane.b32.xlu0 %v385, 124
        %v604 = vpop.permute.xlu0 %603
        %605 = vrot.lane.b32.xlu0 %v386, 124
        %v606 = vpop.permute.xlu0 %605
        %607 = vrot.lane.b32.xlu0 %v387, 124
        %v608 = vpop.permute.xlu0 %607
        %609 = vrot.lane.b32.xlu0 %v388, 124
        %v610 = vpop.permute.xlu0 %609
        %611 = vrot.lane.b32.xlu0 %v389, 124
        %v612 = vpop.permute.xlu0 %611
        %613 = vrot.lane.b32.xlu0 %v390, 124
        %v614 = vpop.permute.xlu0 %613
        %615 = vrot.lane.b32.xlu0 %v391, 124
        %v616 = vpop.permute.xlu0 %615
        %617 = vrot.lane.b32.xlu0 %v392, 124
        %v618 = vpop.permute.xlu0 %617
        %619 = vrot.lane.b32.xlu0 %v393, 124
        %v620 = vpop.permute.xlu0 %619
        %621 = vrot.lane.b32.xlu0 %v394, 124
        %v622 = vpop.permute.xlu0 %621
        %v635 = vadd.f32 %v575, %v600
        %v636 = vadd.f32 %v576, %v602
        %v637 = vadd.f32 %v577, %v604
        %v638 = vadd.f32 %v578, %v606
        %v639 = vadd.f32 %v579, %v608
        %v640 = vadd.f32 %v580, %v610
        %v641 = vadd.f32 %v581, %v612
        %v642 = vadd.f32 %v582, %v614
        %v643 = vadd.f32 %v583, %v616
        %v644 = vadd.f32 %v584, %v618
        %v645 = vadd.f32 %v585, %v620
        %v646 = vadd.f32 %v586, %v622
        %vm647 = vcmask 130048
        %648 = vst.msk [vmem:[#allocation3] sm:$0xff] %vm647, %v635
        %649 = vst.msk [vmem:[#allocation3 + $0x8] sm:$0xff] %vm647, %v636
        %vm650 = vcmask 125952
        %651 = vst.msk [vmem:[#allocation3 + $0x10] sm:$0xf] %vm650, %v637
        %652 = vst.msk [vmem:[#allocation3 + $0x18] sm:$0xff] %vm647, %v638
        %653 = vst.msk [vmem:[#allocation3 + $0x20] sm:$0xff] %vm647, %v639
        %654 = vst.msk [vmem:[#allocation3 + $0x28] sm:$0xf] %vm650, %v640
        %655 = vst.msk [vmem:[#allocation3 + $0x30] sm:$0xff] %vm647, %v641
        %656 = vst.msk [vmem:[#allocation3 + $0x38] sm:$0xff] %vm647, %v642
        %657 = vst.msk [vmem:[#allocation3 + $0x40] sm:$0xf] %vm650, %v643
        %658 = vst.msk [vmem:[#allocation3 + $0x48] sm:$0xff] %vm647, %v644
        %659 = vst.msk [vmem:[#allocation3 + $0x50] sm:$0xff] %vm647, %v645
        %660 = vst.msk [vmem:[#allocation3 + $0x58] sm:$0xf] %vm650, %v646
        %v661 = vld [vmem:[#allocation3] sm:$0xff]
        %v662 = vld [vmem:[#allocation3 + $0x8] sm:$0xff]
        %v663 = vld [vmem:[#allocation3 + $0x18] sm:$0xff]
        %v664 = vld [vmem:[#allocation3 + $0x20] sm:$0xff]
        %v665 = vld [vmem:[#allocation3 + $0x30] sm:$0xff]
        %v666 = vld [vmem:[#allocation3 + $0x38] sm:$0xff]
        %v667 = vld [vmem:[#allocation3 + $0x48] sm:$0xff]
        %v668 = vld [vmem:[#allocation3 + $0x50] sm:$0xff]
        %v669 = vmul.f32 %v661, 0.054488685
        %v670 = vmul.f32 %v662, 0.054488685
        %v671 = vmul.f32 %v663, 0.054488685
        %v672 = vmul.f32 %v664, 0.054488685
        %v673 = vmul.f32 %v665, 0.054488685
        %v674 = vmul.f32 %v666, 0.054488685
        %v675 = vmul.f32 %v667, 0.054488685
        %v676 = vmul.f32 %v668, 0.054488685
        %v677 = vld [vmem:[#allocation3 + $0x1] sm:$0xff]
        %v678 = vld [vmem:[#allocation3 + $0x9] sm:$0xff]
        %v679 = vld [vmem:[#allocation3 + $0x19] sm:$0xff]
        %v680 = vld [vmem:[#allocation3 + $0x21] sm:$0xff]
        %v681 = vld [vmem:[#allocation3 + $0x31] sm:$0xff]
        %v682 = vld [vmem:[#allocation3 + $0x39] sm:$0xff]
        %v683 = vld [vmem:[#allocation3 + $0x49] sm:$0xff]
        %v684 = vld [vmem:[#allocation3 + $0x51] sm:$0xff]
        %v685 = vmul.f32 %v677, 0.24420135
        %v686 = vmul.f32 %v678, 0.24420135
        %v687 = vmul.f32 %v679, 0.24420135
        %v688 = vmul.f32 %v680, 0.24420135
        %v689 = vmul.f32 %v681, 0.24420135
        %v690 = vmul.f32 %v682, 0.24420135
        %v691 = vmul.f32 %v683, 0.24420135
        %v692 = vmul.f32 %v684, 0.24420135
        %v693 = vadd.f32 %v669, %v685
        %v694 = vadd.f32 %v670, %v686
        %v695 = vadd.f32 %v671, %v687
        %v696 = vadd.f32 %v672, %v688
        %v697 = vadd.f32 %v673, %v689
        %v698 = vadd.f32 %v674, %v690
        %v699 = vadd.f32 %v675, %v691
        %v700 = vadd.f32 %v676, %v692
        %v701 = vld [vmem:[#allocation3 + $0x2] sm:$0xff]
        %v702 = vld [vmem:[#allocation3 + $0xa] sm:$0xff]
        %v703 = vld [vmem:[#allocation3 + $0x1a] sm:$0xff]
        %v704 = vld [vmem:[#allocation3 + $0x22] sm:$0xff]
        %v705 = vld [vmem:[#allocation3 + $0x32] sm:$0xff]
        %v706 = vld [vmem:[#allocation3 + $0x3a] sm:$0xff]
        %v707 = vld [vmem:[#allocation3 + $0x4a] sm:$0xff]
        %v708 = vld [vmem:[#allocation3 + $0x52] sm:$0xff]
        %v709 = vmul.f32 %v701, 0.40261996
        %v710 = vmul.f32 %v702, 0.40261996
        %v711 = vmul.f32 %v703, 0.40261996
        %v712 = vmul.f32 %v704, 0.40261996
        %v713 = vmul.f32 %v705, 0.40261996
        %v714 = vmul.f32 %v706, 0.40261996
        %v715 = vmul.f32 %v707, 0.40261996
        %v716 = vmul.f32 %v708, 0.40261996
        %v717 = vadd.f32 %v693, %v709
        %v718 = vadd.f32 %v694, %v710
        %v719 = vadd.f32 %v695, %v711
        %v720 = vadd.f32 %v696, %v712
        %v721 = vadd.f32 %v697, %v713
        %v722 = vadd.f32 %v698, %v714
        %v723 = vadd.f32 %v699, %v715
        %v724 = vadd.f32 %v700, %v716
        %v725 = vld [vmem:[#allocation3 + $0x3] sm:$0xff]
        %v726 = vld [vmem:[#allocation3 + $0xb] sm:$0xff]
        %v727 = vld [vmem:[#allocation3 + $0x1b] sm:$0xff]
        %v728 = vld [vmem:[#allocation3 + $0x23] sm:$0xff]
        %v729 = vld [vmem:[#allocation3 + $0x33] sm:$0xff]
        %v730 = vld [vmem:[#allocation3 + $0x3b] sm:$0xff]
        %v731 = vld [vmem:[#allocation3 + $0x4b] sm:$0xff]
        %v732 = vld [vmem:[#allocation3 + $0x53] sm:$0xff]
        %v733 = vmul.f32 %v725, 0.24420135
        %v734 = vmul.f32 %v726, 0.24420135
        %v735 = vmul.f32 %v727, 0.24420135
        %v736 = vmul.f32 %v728, 0.24420135
        %v737 = vmul.f32 %v729, 0.24420135
        %v738 = vmul.f32 %v730, 0.24420135
        %v739 = vmul.f32 %v731, 0.24420135
        %v740 = vmul.f32 %v732, 0.24420135
        %v741 = vadd.f32 %v717, %v733
        %v742 = vadd.f32 %v718, %v734
        %v743 = vadd.f32 %v719, %v735
        %v744 = vadd.f32 %v720, %v736
        %v745 = vadd.f32 %v721, %v737
        %v746 = vadd.f32 %v722, %v738
        %v747 = vadd.f32 %v723, %v739
        %v748 = vadd.f32 %v724, %v740
        %v749 = vld [vmem:[#allocation3 + $0x4] sm:$0xff]
        %v750 = vld [vmem:[#allocation3 + $0xc] sm:$0xff]
        %v751 = vld [vmem:[#allocation3 + $0x1c] sm:$0xff]
        %v752 = vld [vmem:[#allocation3 + $0x24] sm:$0xff]
        %v753 = vld [vmem:[#allocation3 + $0x34] sm:$0xff]
        %v754 = vld [vmem:[#allocation3 + $0x3c] sm:$0xff]
        %v755 = vld [vmem:[#allocation3 + $0x4c] sm:$0xff]
        %v756 = vld [vmem:[#allocation3 + $0x54] sm:$0xff]
        %v757 = vmul.f32 %v749, 0.054488685
        %v758 = vmul.f32 %v750, 0.054488685
        %v759 = vmul.f32 %v751, 0.054488685
        %v760 = vmul.f32 %v752, 0.054488685
        %v761 = vmul.f32 %v753, 0.054488685
        %v762 = vmul.f32 %v754, 0.054488685
        %v763 = vmul.f32 %v755, 0.054488685
        %v764 = vmul.f32 %v756, 0.054488685
        %v765 = vadd.f32 %v741, %v757
        %v766 = vadd.f32 %v742, %v758
        %v767 = vadd.f32 %v743, %v759
        %v768 = vadd.f32 %v744, %v760
        %v769 = vadd.f32 %v745, %v761
        %v770 = vadd.f32 %v746, %v762
        %v771 = vadd.f32 %v747, %v763
        %v772 = vadd.f32 %v748, %v764
        %773 = vst.msk [vmem:[%s265] sm:$0xff] %vm647, %v765
        %774 = vst.msk [vmem:[%s265 + $0x8] sm:$0xff] %vm647, %v766
        %775 = vst.msk [vmem:[%s265 + $0x10] sm:$0xff] %vm647, %v767
        %776 = vst.msk [vmem:[%s265 + $0x18] sm:$0xff] %vm647, %v768
        %777 = vst.msk [vmem:[%s265 + $0x20] sm:$0xff] %vm647, %v769
        %778 = vst.msk [vmem:[%s265 + $0x28] sm:$0xff] %vm647, %v770
        %779 = vst.msk [vmem:[%s265 + $0x30] sm:$0xff] %vm647, %v771
        %780 = vst.msk [vmem:[%s265 + $0x38] sm:$0xff] %vm647, %v772
        %v781 = vld [vmem:[%s239] sm:$0xff]
        %v782 = vld [vmem:[%s239 + $0x8] sm:$0xff]
        %v783 = vld [vmem:[%s239 + $0x10] sm:$0xff]
        %v784 = vld [vmem:[%s239 + $0x18] sm:$0xff]
        %v785 = vld [vmem:[%s239 + $0x20] sm:$0xff]
        %v786 = vld [vmem:[%s239 + $0x28] sm:$0xff]
        %v787 = vld [vmem:[%s239 + $0x30] sm:$0xff]
        %v788 = vld [vmem:[%s239 + $0x38] sm:$0xff]
        %797 = vrot.lane.b32.xlu0 %v781, 2
        %v798 = vpop.permute.xlu0 %797
        %799 = vrot.lane.b32.xlu0 %v782, 2
        %v800 = vpop.permute.xlu0 %799
        %801 = vrot.lane.b32.xlu0 %v783, 2
        %v802 = vpop.permute.xlu0 %801
        %803 = vrot.lane.b32.xlu0 %v784, 2
        %v804 = vpop.permute.xlu0 %803
        %805 = vrot.lane.b32.xlu0 %v785, 2
        %v806 = vpop.permute.xlu0 %805
        %807 = vrot.lane.b32.xlu0 %v786, 2
        %v808 = vpop.permute.xlu0 %807
        %809 = vrot.lane.b32.xlu0 %v787, 2
        %v810 = vpop.permute.xlu0 %809
        %811 = vrot.lane.b32.xlu0 %v788, 2
        %v812 = vpop.permute.xlu0 %811
        %821 = vst.msk [vmem:[#allocation2 + $0x2] sm:$0xff] %vm362, %v798
        %822 = vst.msk [vmem:[#allocation2 + $0xa] sm:$0xff] %vm362, %v800
        %823 = vst.msk [vmem:[#allocation2 + $0x1a] sm:$0xff] %vm362, %v802
        %824 = vst.msk [vmem:[#allocation2 + $0x22] sm:$0xff] %vm362, %v804
        %825 = vst.msk [vmem:[#allocation2 + $0x32] sm:$0xff] %vm362, %v806
        %826 = vst.msk [vmem:[#allocation2 + $0x3a] sm:$0xff] %vm362, %v808
        %827 = vst.msk [vmem:[#allocation2 + $0x4a] sm:$0xff] %vm362, %v810
        %828 = vst.msk [vmem:[#allocation2 + $0x52] sm:$0xff] %vm362, %v812
        %v829 = vld [vmem:[%s239] sm:$0xff]
        %v830 = vld [vmem:[%s239 + $0x8] sm:$0xff]
        %v831 = vld [vmem:[%s239 + $0x10] sm:$0xff]
        %v832 = vld [vmem:[%s239 + $0x18] sm:$0xff]
        %v833 = vld [vmem:[%s239 + $0x20] sm:$0xff]
        %v834 = vld [vmem:[%s239 + $0x28] sm:$0xff]
        %v835 = vld [vmem:[%s239 + $0x30] sm:$0xff]
        %v836 = vld [vmem:[%s239 + $0x38] sm:$0xff]
        %v837 = vld [vmem:[#allocation2] sm:$0xff]
        %v838 = vld [vmem:[#allocation2 + $0x8] sm:$0xff]
        %v839 = vld [vmem:[#allocation2 + $0x10] sm:$0xf]
        %v840 = vld [vmem:[#allocation2 + $0x18] sm:$0xff]
        %v841 = vld [vmem:[#allocation2 + $0x20] sm:$0xff]
        %v842 = vld [vmem:[#allocation2 + $0x28] sm:$0xf]
        %v843 = vld [vmem:[#allocation2 + $0x30] sm:$0xff]
        %v844 = vld [vmem:[#allocation2 + $0x38] sm:$0xff]
        %v845 = vld [vmem:[#allocation2 + $0x40] sm:$0xf]
        %v846 = vld [vmem:[#allocation2 + $0x48] sm:$0xff]
        %v847 = vld [vmem:[#allocation2 + $0x50] sm:$0xff]
        %v848 = vld [vmem:[#allocation2 + $0x58] sm:$0xf]
        %v849 = vmul.f32 %v837, 0.054488685
        %v850 = vmul.f32 %v838, 0.054488685
        %v851 = vmul.f32 %v839, 0.054488685
        %v852 = vmul.f32 %v840, 0.054488685
        %v853 = vmul.f32 %v841, 0.054488685
        %v854 = vmul.f32 %v842, 0.054488685
        %v855 = vmul.f32 %v843, 0.054488685
        %v856 = vmul.f32 %v844, 0.054488685
        %v857 = vmul.f32 %v845, 0.054488685
        %v858 = vmul.f32 %v846, 0.054488685
        %v859 = vmul.f32 %v847, 0.054488685
        %v860 = vmul.f32 %v848, 0.054488685
        %v861 = vmul.f32 %v837, 0.24420135
        %v862 = vmul.f32 %v838, 0.24420135
        %v863 = vmul.f32 %v839, 0.24420135
        %v864 = vmul.f32 %v840, 0.24420135
        %v865 = vmul.f32 %v841, 0.24420135
        %v866 = vmul.f32 %v842, 0.24420135
        %v867 = vmul.f32 %v843, 0.24420135
        %v868 = vmul.f32 %v844, 0.24420135
        %v869 = vmul.f32 %v845, 0.24420135
        %v870 = vmul.f32 %v846, 0.24420135
        %v871 = vmul.f32 %v847, 0.24420135
        %v872 = vmul.f32 %v848, 0.24420135
        %885 = vrot.lane.b32.xlu0 %v861, 127
        %v886 = vpop.permute.xlu0 %885
        %887 = vrot.lane.b32.xlu0 %v862, 127
        %v888 = vpop.permute.xlu0 %887
        %889 = vrot.lane.b32.xlu0 %v863, 127
        %v890 = vpop.permute.xlu0 %889
        %891 = vrot.lane.b32.xlu0 %v864, 127
        %v892 = vpop.permute.xlu0 %891
        %893 = vrot.lane.b32.xlu0 %v865, 127
        %v894 = vpop.permute.xlu0 %893
        %895 = vrot.lane.b32.xlu0 %v866, 127
        %v896 = vpop.permute.xlu0 %895
        %897 = vrot.lane.b32.xlu0 %v867, 127
        %v898 = vpop.permute.xlu0 %897
        %899 = vrot.lane.b32.xlu0 %v868, 127
        %v900 = vpop.permute.xlu0 %899
        %901 = vrot.lane.b32.xlu0 %v869, 127
        %v902 = vpop.permute.xlu0 %901
        %903 = vrot.lane.b32.xlu0 %v870, 127
        %v904 = vpop.permute.xlu0 %903
        %905 = vrot.lane.b32.xlu0 %v871, 127
        %v906 = vpop.permute.xlu0 %905
        %907 = vrot.lane.b32.xlu0 %v872, 127
        %v908 = vpop.permute.xlu0 %907
        %v921 = vadd.f32 %v849, %v886
        %v922 = vadd.f32 %v850, %v888
        %v923 = vadd.f32 %v851, %v890
        %v924 = vadd.f32 %v852, %v892
        %v925 = vadd.f32 %v853, %v894
        %v926 = vadd.f32 %v854, %v896
        %v927 = vadd.f32 %v855, %v898
        %v928 = vadd.f32 %v856, %v900
        %v929 = vadd.f32 %v857, %v902
        %v930 = vadd.f32 %v858, %v904
        %v931 = vadd.f32 %v859, %v906
        %v932 = vadd.f32 %v860, %v908
        %v933 = vmul.f32 %v837, 0.40261996
        %v934 = vmul.f32 %v838, 0.40261996
        %v935 = vmul.f32 %v839, 0.40261996
        %v936 = vmul.f32 %v840, 0.40261996
        %v937 = vmul.f32 %v841, 0.40261996
        %v938 = vmul.f32 %v842, 0.40261996
        %v939 = vmul.f32 %v843, 0.40261996
        %v940 = vmul.f32 %v844, 0.40261996
        %v941 = vmul.f32 %v845, 0.40261996
        %v942 = vmul.f32 %v846, 0.40261996
        %v943 = vmul.f32 %v847, 0.40261996
        %v944 = vmul.f32 %v848, 0.40261996
        %957 = vrot.lane.b32.xlu0 %v933, 126
        %v958 = vpop.permute.xlu0 %957
        %959 = vrot.lane.b32.xlu0 %v934, 126
        %v960 = vpop.permute.xlu0 %959
        %961 = vrot.lane.b32.xlu0 %v935, 126
        %v962 = vpop.permute.xlu0 %961
        %963 = vrot.lane.b32.xlu0 %v936, 126
        %v964 = vpop.permute.xlu0 %963
        %965 = vrot.lane.b32.xlu0 %v937, 126
        %v966 = vpop.permute.xlu0 %965
        %967 = vrot.lane.b32.xlu0 %v938, 126
        %v968 = vpop.permute.xlu0 %967
        %969 = vrot.lane.b32.xlu0 %v939, 126
        %v970 = vpop.permute.xlu0 %969
        %971 = vrot.lane.b32.xlu0 %v940, 126
        %v972 = vpop.permute.xlu0 %971
        %973 = vrot.lane.b32.xlu0 %v941, 126
        %v974 = vpop.permute.xlu0 %973
        %975 = vrot.lane.b32.xlu0 %v942, 126
        %v976 = vpop.permute.xlu0 %975
        %977 = vrot.lane.b32.xlu0 %v943, 126
        %v978 = vpop.permute.xlu0 %977
        %979 = vrot.lane.b32.xlu0 %v944, 126
        %v980 = vpop.permute.xlu0 %979
        %v993 = vadd.f32 %v921, %v958
        %v994 = vadd.f32 %v922, %v960
        %v995 = vadd.f32 %v923, %v962
        %v996 = vadd.f32 %v924, %v964
        %v997 = vadd.f32 %v925, %v966
        %v998 = vadd.f32 %v926, %v968
        %v999 = vadd.f32 %v927, %v970
        %v1000 = vadd.f32 %v928, %v972
        %v1001 = vadd.f32 %v929, %v974
        %v1002 = vadd.f32 %v930, %v976
        %v1003 = vadd.f32 %v931, %v978
        %v1004 = vadd.f32 %v932, %v980
        %1005 = vrot.lane.b32.xlu0 %v861, 125
        %v1006 = vpop.permute.xlu0 %1005
        %1007 = vrot.lane.b32.xlu0 %v862, 125
        %v1008 = vpop.permute.xlu0 %1007
        %1009 = vrot.lane.b32.xlu0 %v863, 125
        %v1010 = vpop.permute.xlu0 %1009
        %1011 = vrot.lane.b32.xlu0 %v864, 125
        %v1012 = vpop.permute.xlu0 %1011
        %1013 = vrot.lane.b32.xlu0 %v865, 125
        %v1014 = vpop.permute.xlu0 %1013
        %1015 = vrot.lane.b32.xlu0 %v866, 125
        %v1016 = vpop.permute.xlu0 %1015
        %1017 = vrot.lane.b32.xlu0 %v867, 125
        %v1018 = vpop.permute.xlu0 %1017
        %1019 = vrot.lane.b32.xlu0 %v868, 125
        %v1020 = vpop.permute.xlu0 %1019
        %1021 = vrot.lane.b32.xlu0 %v869, 125
        %v1022 = vpop.permute.xlu0 %1021
        %1023 = vrot.lane.b32.xlu0 %v870, 125
        %v1024 = vpop.permute.xlu0 %1023
        %1025 = vrot.lane.b32.xlu0 %v871, 125
        %v1026 = vpop.permute.xlu0 %1025
        %1027 = vrot.lane.b32.xlu0 %v872, 125
        %v1028 = vpop.permute.xlu0 %1027
        %v1041 = vadd.f32 %v993, %v1006
        %v1042 = vadd.f32 %v994, %v1008
        %v1043 = vadd.f32 %v995, %v1010
        %v1044 = vadd.f32 %v996, %v1012
        %v1045 = vadd.f32 %v997, %v1014
        %v1046 = vadd.f32 %v998, %v1016
        %v1047 = vadd.f32 %v999, %v1018
        %v1048 = vadd.f32 %v1000, %v1020
        %v1049 = vadd.f32 %v1001, %v1022
        %v1050 = vadd.f32 %v1002, %v1024
        %v1051 = vadd.f32 %v1003, %v1026
        %v1052 = vadd.f32 %v1004, %v1028
        %1065 = vrot.lane.b32.xlu0 %v849, 124
        %v1066 = vpop.permute.xlu0 %1065
        %1067 = vrot.lane.b32.xlu0 %v850, 124
        %v1068 = vpop.permute.xlu0 %1067
        %1069 = vrot.lane.b32.xlu0 %v851, 124
        %v1070 = vpop.permute.xlu0 %1069
        %1071 = vrot.lane.b32.xlu0 %v852, 124
        %v1072 = vpop.permute.xlu0 %1071
        %1073 = vrot.lane.b32.xlu0 %v853, 124
        %v1074 = vpop.permute.xlu0 %1073
        %1075 = vrot.lane.b32.xlu0 %v854, 124
        %v1076 = vpop.permute.xlu0 %1075
        %1077 = vrot.lane.b32.xlu0 %v855, 124
        %v1078 = vpop.permute.xlu0 %1077
        %1079 = vrot.lane.b32.xlu0 %v856, 124
        %v1080 = vpop.permute.xlu0 %1079
        %1081 = vrot.lane.b32.xlu0 %v857, 124
        %v1082 = vpop.permute.xlu0 %1081
        %1083 = vrot.lane.b32.xlu0 %v858, 124
        %v1084 = vpop.permute.xlu0 %1083
        %1085 = vrot.lane.b32.xlu0 %v859, 124
        %v1086 = vpop.permute.xlu0 %1085
        %1087 = vrot.lane.b32.xlu0 %v860, 124
        %v1088 = vpop.permute.xlu0 %1087
        %v1101 = vadd.f32 %v1041, %v1066
        %v1102 = vadd.f32 %v1042, %v1068
        %v1103 = vadd.f32 %v1043, %v1070
        %v1104 = vadd.f32 %v1044, %v1072
        %v1105 = vadd.f32 %v1045, %v1074
        %v1106 = vadd.f32 %v1046, %v1076
        %v1107 = vadd.f32 %v1047, %v1078
        %v1108 = vadd.f32 %v1048, %v1080
        %v1109 = vadd.f32 %v1049, %v1082
        %v1110 = vadd.f32 %v1050, %v1084
        %v1111 = vadd.f32 %v1051, %v1086
        %v1112 = vadd.f32 %v1052, %v1088
        %1113 = vst.msk [vmem:[#allocation3] sm:$0xff] %vm647, %v1101
        %1114 = vst.msk [vmem:[#allocation3 + $0x8] sm:$0xff] %vm647, %v1102
        %1115 = vst.msk [vmem:[#allocation3 + $0x10] sm:$0xf] %vm650, %v1103
        %1116 = vst.msk [vmem:[#allocation3 + $0x18] sm:$0xff] %vm647, %v1104
        %1117 = vst.msk [vmem:[#allocation3 + $0x20] sm:$0xff] %vm647, %v1105
        %1118 = vst.msk [vmem:[#allocation3 + $0x28] sm:$0xf] %vm650, %v1106
        %1119 = vst.msk [vmem:[#allocation3 + $0x30] sm:$0xff] %vm647, %v1107
        %1120 = vst.msk [vmem:[#allocation3 + $0x38] sm:$0xff] %vm647, %v1108
        %1121 = vst.msk [vmem:[#allocation3 + $0x40] sm:$0xf] %vm650, %v1109
        %1122 = vst.msk [vmem:[#allocation3 + $0x48] sm:$0xff] %vm647, %v1110
        %1123 = vst.msk [vmem:[#allocation3 + $0x50] sm:$0xff] %vm647, %v1111
        %1124 = vst.msk [vmem:[#allocation3 + $0x58] sm:$0xf] %vm650, %v1112
        %v1125 = vld [vmem:[#allocation3] sm:$0xff]
        %v1126 = vld [vmem:[#allocation3 + $0x8] sm:$0xff]
        %v1127 = vld [vmem:[#allocation3 + $0x18] sm:$0xff]
        %v1128 = vld [vmem:[#allocation3 + $0x20] sm:$0xff]
        %v1129 = vld [vmem:[#allocation3 + $0x30] sm:$0xff]
        %v1130 = vld [vmem:[#allocation3 + $0x38] sm:$0xff]
        %v1131 = vld [vmem:[#allocation3 + $0x48] sm:$0xff]
        %v1132 = vld [vmem:[#allocation3 + $0x50] sm:$0xff]
        %v1133 = vmul.f32 %v1125, 0.054488685
        %v1134 = vmul.f32 %v1126, 0.054488685
        %v1135 = vmul.f32 %v1127, 0.054488685
        %v1136 = vmul.f32 %v1128, 0.054488685
        %v1137 = vmul.f32 %v1129, 0.054488685
        %v1138 = vmul.f32 %v1130, 0.054488685
        %v1139 = vmul.f32 %v1131, 0.054488685
        %v1140 = vmul.f32 %v1132, 0.054488685
        %v1141 = vld [vmem:[#allocation3 + $0x1] sm:$0xff]
        %v1142 = vld [vmem:[#allocation3 + $0x9] sm:$0xff]
        %v1143 = vld [vmem:[#allocation3 + $0x19] sm:$0xff]
        %v1144 = vld [vmem:[#allocation3 + $0x21] sm:$0xff]
        %v1145 = vld [vmem:[#allocation3 + $0x31] sm:$0xff]
        %v1146 = vld [vmem:[#allocation3 + $0x39] sm:$0xff]
        %v1147 = vld [vmem:[#allocation3 + $0x49] sm:$0xff]
        %v1148 = vld [vmem:[#allocation3 + $0x51] sm:$0xff]
        %v1149 = vmul.f32 %v1141, 0.24420135
        %v1150 = vmul.f32 %v1142, 0.24420135
        %v1151 = vmul.f32 %v1143, 0.24420135
        %v1152 = vmul.f32 %v1144, 0.24420135
        %v1153 = vmul.f32 %v1145, 0.24420135
        %v1154 = vmul.f32 %v1146, 0.24420135
        %v1155 = vmul.f32 %v1147, 0.24420135
        %v1156 = vmul.f32 %v1148, 0.24420135
        %v1157 = vadd.f32 %v1133, %v1149
        %v1158 = vadd.f32 %v1134, %v1150
        %v1159 = vadd.f32 %v1135, %v1151
        %v1160 = vadd.f32 %v1136, %v1152
        %v1161 = vadd.f32 %v1137, %v1153
        %v1162 = vadd.f32 %v1138, %v1154
        %v1163 = vadd.f32 %v1139, %v1155
        %v1164 = vadd.f32 %v1140, %v1156
        %v1165 = vld [vmem:[#allocation3 + $0x2] sm:$0xff]
        %v1166 = vld [vmem:[#allocation3 + $0xa] sm:$0xff]
        %v1167 = vld [vmem:[#allocation3 + $0x1a] sm:$0xff]
        %v1168 = vld [vmem:[#allocation3 + $0x22] sm:$0xff]
        %v1169 = vld [vmem:[#allocation3 + $0x32] sm:$0xff]
        %v1170 = vld [vmem:[#allocation3 + $0x3a] sm:$0xff]
        %v1171 = vld [vmem:[#allocation3 + $0x4a] sm:$0xff]
        %v1172 = vld [vmem:[#allocation3 + $0x52] sm:$0xff]
        %v1173 = vmul.f32 %v1165, 0.40261996
        %v1174 = vmul.f32 %v1166, 0.40261996
        %v1175 = vmul.f32 %v1167, 0.40261996
        %v1176 = vmul.f32 %v1168, 0.40261996
        %v1177 = vmul.f32 %v1169, 0.40261996
        %v1178 = vmul.f32 %v1170, 0.40261996
        %v1179 = vmul.f32 %v1171, 0.40261996
        %v1180 = vmul.f32 %v1172, 0.40261996
        %v1181 = vadd.f32 %v1157, %v1173
        %v1182 = vadd.f32 %v1158, %v1174
        %v1183 = vadd.f32 %v1159, %v1175
        %v1184 = vadd.f32 %v1160, %v1176
        %v1185 = vadd.f32 %v1161, %v1177
        %v1186 = vadd.f32 %v1162, %v1178
        %v1187 = vadd.f32 %v1163, %v1179
        %v1188 = vadd.f32 %v1164, %v1180
        %v1189 = vld [vmem:[#allocation3 + $0x3] sm:$0xff]
        %v1190 = vld [vmem:[#allocation3 + $0xb] sm:$0xff]
        %v1191 = vld [vmem:[#allocation3 + $0x1b] sm:$0xff]
        %v1192 = vld [vmem:[#allocation3 + $0x23] sm:$0xff]
        %v1193 = vld [vmem:[#allocation3 + $0x33] sm:$0xff]
        %v1194 = vld [vmem:[#allocation3 + $0x3b] sm:$0xff]
        %v1195 = vld [vmem:[#allocation3 + $0x4b] sm:$0xff]
        %v1196 = vld [vmem:[#allocation3 + $0x53] sm:$0xff]
        %v1197 = vmul.f32 %v1189, 0.24420135
        %v1198 = vmul.f32 %v1190, 0.24420135
        %v1199 = vmul.f32 %v1191, 0.24420135
        %v1200 = vmul.f32 %v1192, 0.24420135
        %v1201 = vmul.f32 %v1193, 0.24420135
        %v1202 = vmul.f32 %v1194, 0.24420135
        %v1203 = vmul.f32 %v1195, 0.24420135
        %v1204 = vmul.f32 %v1196, 0.24420135
        %v1205 = vadd.f32 %v1181, %v1197
        %v1206 = vadd.f32 %v1182, %v1198
        %v1207 = vadd.f32 %v1183, %v1199
        %v1208 = vadd.f32 %v1184, %v1200
        %v1209 = vadd.f32 %v1185, %v1201
        %v1210 = vadd.f32 %v1186, %v1202
        %v1211 = vadd.f32 %v1187, %v1203
        %v1212 = vadd.f32 %v1188, %v1204
        %v1213 = vld [vmem:[#allocation3 + $0x4] sm:$0xff]
        %v1214 = vld [vmem:[#allocation3 + $0xc] sm:$0xff]
        %v1215 = vld [vmem:[#allocation3 + $0x1c] sm:$0xff]
        %v1216 = vld [vmem:[#allocation3 + $0x24] sm:$0xff]
        %v1217 = vld [vmem:[#allocation3 + $0x34] sm:$0xff]
        %v1218 = vld [vmem:[#allocation3 + $0x3c] sm:$0xff]
        %v1219 = vld [vmem:[#allocation3 + $0x4c] sm:$0xff]
        %v1220 = vld [vmem:[#allocation3 + $0x54] sm:$0xff]
        %v1221 = vmul.f32 %v1213, 0.054488685
        %v1222 = vmul.f32 %v1214, 0.054488685
        %v1223 = vmul.f32 %v1215, 0.054488685
        %v1224 = vmul.f32 %v1216, 0.054488685
        %v1225 = vmul.f32 %v1217, 0.054488685
        %v1226 = vmul.f32 %v1218, 0.054488685
        %v1227 = vmul.f32 %v1219, 0.054488685
        %v1228 = vmul.f32 %v1220, 0.054488685
        %v1229 = vadd.f32 %v1205, %v1221
        %v1230 = vadd.f32 %v1206, %v1222
        %v1231 = vadd.f32 %v1207, %v1223
        %v1232 = vadd.f32 %v1208, %v1224
        %v1233 = vadd.f32 %v1209, %v1225
        %v1234 = vadd.f32 %v1210, %v1226
        %v1235 = vadd.f32 %v1211, %v1227
        %v1236 = vadd.f32 %v1212, %v1228
        %v1237 = vsub.f32 %v829, %v1229
        %v1238 = vsub.f32 %v830, %v1230
        %v1239 = vsub.f32 %v831, %v1231
        %v1240 = vsub.f32 %v832, %v1232
        %v1241 = vsub.f32 %v833, %v1233
        %v1242 = vsub.f32 %v834, %v1234
        %v1243 = vsub.f32 %v835, %v1235
        %v1244 = vsub.f32 %v836, %v1236
        %1245 = vst.msk [vmem:[%s272] sm:$0xff] %vm647, %v1237
        %1246 = vst.msk [vmem:[%s272 + $0x8] sm:$0xff] %vm647, %v1238
        %1247 = vst.msk [vmem:[%s272 + $0x10] sm:$0xff] %vm647, %v1239
        %1248 = vst.msk [vmem:[%s272 + $0x18] sm:$0xff] %vm647, %v1240
        %1249 = vst.msk [vmem:[%s272 + $0x20] sm:$0xff] %vm647, %v1241
        %1250 = vst.msk [vmem:[%s272 + $0x28] sm:$0xff] %vm647, %v1242
        %1251 = vst.msk [vmem:[%s272 + $0x30] sm:$0xff] %vm647, %v1243
        %1252 = vst.msk [vmem:[%s272 + $0x38] sm:$0xff] %vm647, %v1244
        %v1253 = vld [vmem:[%s265] sm:$0xff]
        %v1254 = vld [vmem:[%s265 + $0x8] sm:$0xff]
        %v1255 = vld [vmem:[%s265 + $0x10] sm:$0xff]
        %v1256 = vld [vmem:[%s265 + $0x18] sm:$0xff]
        %v1257 = vld [vmem:[%s265 + $0x20] sm:$0xff]
        %v1258 = vld [vmem:[%s265 + $0x28] sm:$0xff]
        %v1259 = vld [vmem:[%s265 + $0x30] sm:$0xff]
        %v1260 = vld [vmem:[%s265 + $0x38] sm:$0xff]
        %v1261 = vadd.f32 %v1253, %v1237
        %v1262 = vadd.f32 %v1254, %v1238
        %v1263 = vadd.f32 %v1255, %v1239
        %v1264 = vadd.f32 %v1256, %v1240
        %v1265 = vadd.f32 %v1257, %v1241
        %v1266 = vadd.f32 %v1258, %v1242
        %v1267 = vadd.f32 %v1259, %v1243
        %v1268 = vadd.f32 %v1260, %v1244
        %v1269 = vmax.f32 %v1261, 0.0
        %v1270 = vmax.f32 %v1262, 0.0
        %v1271 = vmax.f32 %v1263, 0.0
        %v1272 = vmax.f32 %v1264, 0.0
        %v1273 = vmax.f32 %v1265, 0.0
        %v1274 = vmax.f32 %v1266, 0.0
        %v1275 = vmax.f32 %v1267, 0.0
        %v1276 = vmax.f32 %v1268, 0.0
        %v1277 = vmin.f32 %v1269, 1.0
        %v1278 = vmin.f32 %v1270, 1.0
        %v1279 = vmin.f32 %v1271, 1.0
        %v1280 = vmin.f32 %v1272, 1.0
        %v1281 = vmin.f32 %v1273, 1.0
        %v1282 = vmin.f32 %v1274, 1.0
        %v1283 = vmin.f32 %v1275, 1.0
        %v1284 = vmin.f32 %v1276, 1.0
        %1285 = vst.msk [vmem:[%s279] sm:$0xff] %vm647, %v1277
        %1286 = vst.msk [vmem:[%s279 + $0x8] sm:$0xff] %vm647, %v1278
        %1287 = vst.msk [vmem:[%s279 + $0x10] sm:$0xff] %vm647, %v1279
        %1288 = vst.msk [vmem:[%s279 + $0x18] sm:$0xff] %vm647, %v1280
        %1289 = vst.msk [vmem:[%s279 + $0x20] sm:$0xff] %vm647, %v1281
        %1290 = vst.msk [vmem:[%s279 + $0x28] sm:$0xff] %vm647, %v1282
        %1291 = vst.msk [vmem:[%s279 + $0x30] sm:$0xff] %vm647, %v1283
        %1292 = vst.msk [vmem:[%s279 + $0x38] sm:$0xff] %vm647, %v1284
        %s1293 = sand.u32 %s88, 1
        %s1294 = scalar_lea.sflag [#allocation6], %s1293
        %s1295 = sand.u32 %s88, 1
        %s1296 = smul.addr %s1295, 64
        %s1297 = scalar_lea.vmem [#allocation9], %s1296
        %s1298 = sand.u32 %s28, 1
        %s1299 = scalar_lea.sflag [#allocation11], %s1298
        %s1300 = sand.u32 %s114, 1
        %s1301 = smul.addr %s1300, 64
        %s1302 = scalar_lea.vmem [#allocation10], %s1301
        %s1303 = sand.u32 %s28, 1
        %s1304 = scalar_lea.sflag [#allocation11], %s1303
        %s1305 = sand.u32 %s140, 1
        %s1306 = smul.addr %s1305, 64
        %s1307 = scalar_lea.vmem [#allocation12], %s1306
        // Predicated region
        $region37: #{tpu_custom_call.1} parent=27 // pred_check
          %p1308 = pneg %p98
        $region38: #{tpu_custom_call.1} parent=27 // pred_check_branch
          %1310 = sbr.rel (%p1308) target = $region40
        $region39: #{tpu_custom_call.1} parent=27 // pred_region
          %s1311 = smul.u32 4, %s28
          %1313 = vsyncadd %s1294, 0
          %s1314 = smul.addr %s1311, 2
          %s1315 = smul.addr %s1314, 8
          %s1316 = scalar_lea.hbm %s2, %s1315
          %s1317 = sshll.u32 %s1297, 4
          %s1318 = int_to_ptr.vmem [resolvable:$true] %s1317
          %s1319 = sshll.u32 %s1316, 4
          %s1320 = int_to_ptr.hbm [resolvable:$true] %s1319
          %1325 = dma.vmem_to_hbm [thread:$0]  %s1318, 1024, %s1320, %s1294, 128, 128, 8
        $region40: #{tpu_custom_call.1} parent=27 // pred_fallthru
          _
        // Predicated region
        $region41: #{tpu_custom_call.1} parent=27 // pred_check
          %p1326 = pneg %p124
        $region42: #{tpu_custom_call.1} parent=27 // pred_check_branch
          %1328 = sbr.rel (%p1326) target = $region44
        $region43: #{tpu_custom_call.1} parent=27 // pred_region
          %s1329 = smul.u32 4, %s28
          %1331 = vsyncadd %s1299, 0
          %s1332 = smul.addr %s1329, 2
          %s1333 = smul.addr %s1332, 8
          %s1334 = scalar_lea.hbm %s3, %s1333
          %s1335 = sshll.u32 %s1302, 4
          %s1336 = int_to_ptr.vmem [resolvable:$true] %s1335
          %s1337 = sshll.u32 %s1334, 4
          %s1338 = int_to_ptr.hbm [resolvable:$true] %s1337
          %1343 = dma.vmem_to_hbm [thread:$0]  %s1336, 1024, %s1338, %s1299, 128, 128, 8
        $region44: #{tpu_custom_call.1} parent=27 // pred_fallthru
          _
        // Predicated region
        $region45: #{tpu_custom_call.1} parent=27 // pred_check
          %p1344 = pneg %p150
        $region46: #{tpu_custom_call.1} parent=27 // pred_check_branch
          %1346 = sbr.rel (%p1344) target = $region48
        $region47: #{tpu_custom_call.1} parent=27 // pred_region
          %s1347 = smul.u32 4, %s28
          %1349 = vsyncadd %s1304, 0
          %s1350 = smul.addr %s1347, 2
          %s1351 = smul.addr %s1350, 8
          %s1352 = scalar_lea.hbm %s4, %s1351
          %s1353 = sshll.u32 %s1307, 4
          %s1354 = int_to_ptr.vmem [resolvable:$true] %s1353
          %s1355 = sshll.u32 %s1352, 4
          %s1356 = int_to_ptr.hbm [resolvable:$true] %s1355
          %1361 = dma.vmem_to_hbm [thread:$0]  %s1354, 1024, %s1356, %s1304, 128, 128, 8
        $region48: #{tpu_custom_call.1} parent=27 // pred_fallthru
          _
      $region28: #{tpu_custom_call.1} parent=5 // pred_fallthru
        _
      %p1362 = scmp.le.s32.totalorder 2, %s23
      // Predicated region
      $region49: #{tpu_custom_call.1} parent=5 // pred_check
        %p1363 = pneg %p1362
      $region50: #{tpu_custom_call.1} parent=5 // pred_check_branch
        %1365 = sbr.rel (%p1363) target = $region52
      $region51: #{tpu_custom_call.1} parent=5 // pred_region
        %s1366 = ssub.s32 %s23, 2
        // Predicated region
        $region53: #{tpu_custom_call.1} parent=51 // pred_check
          %p1367 = pneg %p104
        $region54: #{tpu_custom_call.1} parent=51 // pred_check_branch
          %1369 = sbr.rel (%p1367) target = $region56
        $region55: #{tpu_custom_call.1} parent=51 // pred_region
          %s1370 = sand.u32 %s89, 1
          %s1371 = scalar_lea.sflag [#allocation6], %s1370
          %s1372 = sand.u32 %s89, 1
          %s1373 = smul.addr %s1372, 64
          %s1374 = scalar_lea.vmem [#allocation9], %s1373
          %1376 = dma.done %s1371, 1024
        $region56: #{tpu_custom_call.1} parent=51 // pred_fallthru
          _
        // Predicated region
        $region57: #{tpu_custom_call.1} parent=51 // pred_check
          %p1377 = pneg %p130
        $region58: #{tpu_custom_call.1} parent=51 // pred_check_branch
          %1379 = sbr.rel (%p1377) target = $region60
        $region59: #{tpu_custom_call.1} parent=51 // pred_region
          %s1380 = sand.u32 %s29, 1
          %s1381 = scalar_lea.sflag [#allocation11], %s1380
          %s1382 = sand.u32 %s115, 1
          %s1383 = smul.addr %s1382, 64
          %s1384 = scalar_lea.vmem [#allocation10], %s1383
          %1386 = dma.done %s1381, 1024
        $region60: #{tpu_custom_call.1} parent=51 // pred_fallthru
          _
        // Predicated region
        $region61: #{tpu_custom_call.1} parent=51 // pred_check
          %p1387 = pneg %p156
        $region62: #{tpu_custom_call.1} parent=51 // pred_check_branch
          %1389 = sbr.rel (%p1387) target = $region64
        $region63: #{tpu_custom_call.1} parent=51 // pred_region
          %s1390 = sand.u32 %s29, 1
          %s1391 = scalar_lea.sflag [#allocation11], %s1390
          %s1392 = sand.u32 %s141, 1
          %s1393 = smul.addr %s1392, 64
          %s1394 = scalar_lea.vmem [#allocation12], %s1393
          %1396 = dma.done %s1391, 1024
        $region64: #{tpu_custom_call.1} parent=51 // pred_fallthru
          _
      $region52: #{tpu_custom_call.1} parent=5 // pred_fallthru
        _
    $region6: #{tpu_custom_call.1} parent=1 // loop_footer
      %s27 = sadd.s32 1, %s23
    $region7: #{tpu_custom_call.1} parent=1 // loop_footer_branch
      %22 = sbr.rel target = $region3
    $region8: #{tpu_custom_call.1} parent=1 // loop_exit
      _
    %1397 = vsyncpa [#allocation5], 1
    %s1398 = scalar_lea.sflag [#allocation5], 1
    %1399 = vsyncpa %s1398, 1
    %1400 = vsyncpa [#allocation8], 1
    %s1401 = scalar_lea.sflag [#allocation8], 1
    %1402 = vsyncpa %s1401, 1
    %1403 = vsyncpa [#allocation6], 1
    %s1404 = scalar_lea.sflag [#allocation6], 1
    %1405 = vsyncpa %s1404, 1
    %1406 = vsyncpa [#allocation11], 1
    %s1407 = scalar_lea.sflag [#allocation11], 1
    %1408 = vsyncpa %s1407, 1

</llo_original>
